<compile_context>
chip_gen: v5e
topology: v5e:2x2
jax: 0.10.0
libtpu: 0.0.40
codegen_flags: <defaults>
</compile_context>

<pallas_src>
import functools

import jax
import jax.numpy as jnp
from jax.experimental import pallas as pl
from jax.experimental.pallas import tpu as pltpu

VMEM = pltpu.MemorySpace.VMEM
_BLK = 128           # lane-aligned width of one pool-offset column block
_POOL = 2            # AvgPool2d(2)


# ---------------------------------------------------------------------------
# The single fused Pallas kernel
# ---------------------------------------------------------------------------
def _fused_autoencoder_kernel(x_ref, w1_ref, b1_ref, w2_ref, b2_ref,
                              wt1_ref, bt1_ref, wt2_ref, bt2_ref, o_ref):
    """conv1+ReLU+pool, conv2+ReLU+pool, ConvT1+ReLU, ConvT2+tanh in one call.

    x_ref  : (N, Cin*H*W)        flattened NCHW input (rows (ci, h, w))
    w1_ref : (Cin*H*W, 4*_BLK)   pooled block-Toeplitz conv1 weight
    w2_ref : (_BLK, 4*_BLK)      pooled block-Toeplitz conv2 weight
    wt1_ref: (_BLK, 300)         ConvT1 (1x1 input -> dense), cols (co, a, b)
    wt2_ref: (300, 625)          ConvT2 block-Toeplitz weight, cols (co, a, b)
    b*_ref : (1, cols)           matching biases (zero in padded columns)
    o_ref  : (N, 625)            tanh output
    """
    def gemm(a, w_ref, b_ref):
        return jnp.dot(a, w_ref[...],
                       preferred_element_type=jnp.float32) + b_ref[...]

    def relu_pool(h):            # ReLU, then mean of the 4 pool-offset blocks
        h = jnp.maximum(h, 0.0)
        acc = h[:, 0:_BLK]
        for off in range(1, _POOL * _POOL):           # vreg-aligned lane slices
            acc = acc + h[:, off * _BLK:(off + 1) * _BLK]
        return acc * (1.0 / (_POOL * _POOL))

    x = x_ref[...]
    p1 = relu_pool(gemm(x, w1_ref, b1_ref))            # (N, 128): 108 valid
    p2 = relu_pool(gemm(p1, w2_ref, b2_ref))           # (N, 128):  12 valid
    z1 = jnp.maximum(gemm(p2, wt1_ref, bt1_ref), 0.0)  # (N, 300)
    o_ref[...] = jnp.tanh(gemm(z1, wt2_ref, bt2_ref))  # (N, 625)


# ---------------------------------------------------------------------------
# One-time weight packing into GEMM layouts (runs once, outside the fwd path)
# ---------------------------------------------------------------------------
def _conv_relu_pool_toeplitz(w, b, hin, pool, blk):
    """Pack Conv2d('VALID') (+external ReLU) + AvgPool2d(pool) as one GEMM.

    Rows ordered (ci, h, w) so a flattened NCHW image multiplies directly.
    Columns ordered (dh, dw | co, oh, ow): one `blk`-wide zero-padded block per
    pool offset; the bias has b[co] in valid columns and 0 in the padding.
    """
    cout, cin, k, _ = w.shape
    hconv = hin - k + 1
    hp = hconv // pool
    bw = cout * hp * hp
    assert bw <= blk, (bw, blk)

    pos = pool * jnp.arange(hp)[None, :] + jnp.arange(pool)[:, None]  # (pool,hp)
    delta = jnp.arange(hin)[:, None, None] - pos[None]                # h - i
    valid = (delta >= 0) & (delta < k)
    dcl = jnp.clip(delta, 0, k - 1)
    g = w[:, :, dcl, :]          # (co, ci, h, dh, oh, k)
    g = g[..., dcl]              # (co, ci, h, dh, oh, w, dw, ow)
    mask = valid[:, :, :, None, None, None] & valid[None, None, None, :, :, :]
    g = g * mask[None, None].astype(g.dtype)
    t = jnp.transpose(g, (1, 2, 5, 3, 6, 0, 4, 7))    # (ci,h,w, dh,dw, co,oh,ow)
    t = t.reshape(cin * hin * hin, pool * pool, bw)
    t = jnp.pad(t, ((0, 0), (0, 0), (0, blk - bw)))
    w_toep = t.reshape(cin * hin * hin, pool * pool * blk)

    bias_blk = jnp.pad(jnp.repeat(b, hp * hp), (0, blk - bw))
    bias = jnp.tile(bias_blk, pool * pool)[None, :]
    return w_toep, bias, hp


def _convT_toeplitz(w, b, hin):
    """ConvTranspose2d (stride 1) as one GEMM: rows (ci, p, q), cols (co, a, b)."""
    cin, cout, k, _ = w.shape
    hout = hin + k - 1
    d = jnp.arange(hout)[None, :] - jnp.arange(hin)[:, None]   # d[p, a] = a - p
    valid = (d >= 0) & (d < k)
    dc = jnp.clip(d, 0, k - 1)
    g = w[:, :, dc, :]           # (ci, co, p, a, kw)
    g = g[..., dc]               # (ci, co, p, a, q, b)
    mask = valid[:, :, None, None] & valid[None, None, :, :]
    g = g * mask[None, None].astype(g.dtype)
    w_toep = jnp.transpose(g, (0, 2, 4, 1, 3, 5)).reshape(
        cin * hin * hin, cout * hout * hout)
    bias = jnp.repeat(b, hout * hout)[None, :]
    return w_toep, bias, hout


def pack_params(p, in_hw=16):
    w1, b1 = p["w1"], p["b1"]          # (3, Cin, 5, 5), (3,)
    w2, b2 = p["w2"], p["b2"]          # (12, 3, 5, 5),  (12,)
    wt1, bt1 = p["wt1"], p["bt1"]      # (12, 3, 10, 10), (3,)
    wt2, bt2 = p["wt2"], p["bt2"]      # (3, 1, 16, 16),  (1,)

    cout1 = w1.shape[0]
    cout2, cin2 = w2.shape[0], w2.shape[1]
    t1_cin, t1_cout, t1_k, _ = wt1.shape
    t2_cin, t2_cout, t2_k, _ = wt2.shape
    assert cin2 == cout1 and t1_cin == cout2 and t2_cin == t1_cout

    # encoder stage 1: Conv2d + ReLU + AvgPool2d as pooled block-Toeplitz GEMM
    w1p, b1p, hp1 = _conv_relu_pool_toeplitz(w1, b1, in_hw, _POOL, _BLK)
    # encoder stage 2: input is the (cout1, hp1, hp1) pooled map == the first
    # cout1*hp1*hp1 lanes of stage 1's pooled block (channel-major order).
    w2p, b2p, hp2 = _conv_relu_pool_toeplitz(w2, b2, hp1, _POOL, _BLK)
    assert hp2 == 1, "bottleneck must be 1x1 for ConvTranspose1-as-dense"
    w2p = jnp.pad(w2p, ((0, _BLK - w2p.shape[0]), (0, 0)))   # rows 108 -> 128

    # decoder stage 1: ConvTranspose2d on a 1x1 map == dense layer.
    wt1p = jnp.pad(wt1.reshape(t1_cin, t1_cout * t1_k * t1_k),
                   ((0, _BLK - t1_cin), (0, 0)))             # rows 12 -> 128
    bt1p = jnp.repeat(bt1, t1_k * t1_k)[None, :]             # (1, 300)

    # decoder stage 2: ConvTranspose2d as one block-Toeplitz GEMM.
    wt2p, bt2p, out_hw = _convT_toeplitz(wt2, bt2, t1_k)     # (300,625),(1,625)

    return {
        "w1p": w1p, "b1p": b1p, "w2p": w2p, "b2p": b2p,
        "wt1p": wt1p, "bt1p": bt1p, "wt2p": wt2p, "bt2p": bt2p,
        "out_c": int(t2_cout), "out_hw": int(out_hw),
    }


# ---------------------------------------------------------------------------
# AutoEncoderConv forward: one pallas_call, metadata-only reshapes around it
# ---------------------------------------------------------------------------
def autoencoder_forward(x_nchw, packed):
    n = x_nchw.shape[0]
    x_flat = x_nchw.reshape(n, -1)             # (N, Cin*H*W), rows (ci, h, w)
    out_cols = packed["wt2p"].shape[1]

    y = pl.pallas_call(
        _fused_autoencoder_kernel,
        out_shape=jax.ShapeDtypeStruct((n, out_cols), jnp.float32),
        in_specs=[pl.BlockSpec(memory_space=VMEM)] * 9,
        out_specs=pl.BlockSpec(memory_space=VMEM),
    )(x_flat, packed["w1p"], packed["b1p"], packed["w2p"], packed["b2p"],
      packed["wt1p"], packed["bt1p"], packed["wt2p"], packed["bt2p"])

    # output columns are ordered (co, a, b) -> reshape straight to NCHW
    return y.reshape(n, packed["out_c"], packed["out_hw"], packed["out_hw"])


# ---------------------------------------------------------------------------
# Pure-JAX (XLA) reference for validation
# ---------------------------------------------------------------------------
def _ref_conv(x, w, b):
    y = jax.lax.conv_general_dilated(
        x, w, (1, 1), "VALID", dimension_numbers=("NCHW", "OIHW", "NCHW"))
    return y + b[None, :, None, None]


def _ref_avgpool(x):
    n, c, h, w = x.shape
    ho, wo = h // 2, w // 2
    return x[:, :, :2 * ho, :2 * wo].reshape(n, c, ho, 2, wo, 2).mean(axis=(3, 5))


def _ref_convT(x, w, b):
    k = w.shape[2]
    xpad = jnp.pad(x, ((0, 0), (0, 0), (k - 1, k - 1), (k - 1, k - 1)))
    wf = jnp.transpose(jnp.flip(w, (2, 3)), (1, 0, 2, 3))
    return _ref_conv(xpad, wf, b)


def reference_forward(x, p):
    y = jax.nn.relu(_ref_conv(x, p["w1"], p["b1"]))
    y = _ref_avgpool(y)
    y = jax.nn.relu(_ref_conv(y, p["w2"], p["b2"]))
    y = _ref_avgpool(y)
    y = jax.nn.relu(_ref_convT(y, p["wt1"], p["bt1"]))
    y = jnp.tanh(_ref_convT(y, p["wt2"], p["bt2"]))
    return y


# ---------------------------------------------------------------------------
if __name__ == "__main__":
    in_channels = 4
    key = jax.random.PRNGKey(0)
    ks = jax.random.split(key, 9)

    x = jax.random.normal(ks[0], (2, in_channels, 16, 16), jnp.float32)

    def rnd(k, shape, scale=0.1):
        return scale * jax.random.normal(k, shape, jnp.float32)

    params = {
        # encoder
        "w1": rnd(ks[1], (3, in_channels, 5, 5)), "b1": rnd(ks[2], (3,)),
        "w2": rnd(ks[3], (12, 3, 5, 5)),          "b2": rnd(ks[4], (12,)),
        # decoder (ConvTranspose2d weights are (Cin, Cout, KH, KW))
        "wt1": rnd(ks[5], (12, 3, 10, 10)),       "bt1": rnd(ks[6], (3,)),
        "wt2": rnd(ks[7], (3, 1, 16, 16)),        "bt2": rnd(ks[8], (1,)),
    }

    packed = pack_params(params, in_hw=16)       # pre-pack weights once
    fwd = jax.jit(functools.partial(autoencoder_forward, packed=packed))

    out = jax.block_until_ready(fwd(x))
    assert out.shape == (2, 1, 25, 25), out.shape

    ref = jax.block_until_ready(reference_forward(x, params))
    assert jnp.all(jnp.isfinite(out))
    assert jnp.allclose(out, ref, atol=2e-3, rtol=2e-3), float(
        jnp.max(jnp.abs(out - ref)))

    print("KERNEL_OK")
</pallas_src>

<mosaic_0001>
module attributes {stable_mosaic.version = 11 : i64} {
  func.func @_fused_autoencoder_kernel(%arg0: memref<2x1024xf32, #tpu.memory_space<vmem>>, %arg1: memref<1024x512xf32, #tpu.memory_space<vmem>>, %arg2: memref<1x512xf32, #tpu.memory_space<vmem>>, %arg3: memref<128x512xf32, #tpu.memory_space<vmem>>, %arg4: memref<1x512xf32, #tpu.memory_space<vmem>>, %arg5: memref<128x300xf32, #tpu.memory_space<vmem>>, %arg6: memref<1x300xf32, #tpu.memory_space<vmem>>, %arg7: memref<300x625xf32, #tpu.memory_space<vmem>>, %arg8: memref<1x625xf32, #tpu.memory_space<vmem>>, %arg9: memref<2x625xf32, #tpu.memory_space<vmem>>) attributes {dimension_semantics = [], scalar_prefetch = 0 : i64, scratch_operands = 0 : i64, tpu.core_type = #tpu.core_type<tc>} {
    %c0 = arith.constant 0 : index
    %c0_0 = arith.constant 0 : index
    %0 = vector.load %arg0[%c0, %c0_0] : memref<2x1024xf32, #tpu.memory_space<vmem>>, vector<2x1024xf32>
    %c0_1 = arith.constant 0 : index
    %c0_2 = arith.constant 0 : index
    %1 = vector.load %arg1[%c0_1, %c0_2] : memref<1024x512xf32, #tpu.memory_space<vmem>>, vector<1024x512xf32>
    %cst = arith.constant dense<0.000000e+00> : vector<2x512xf32>
    %2 = tpu.matmul %0, %1, %cst {dimension_numbers = #tpu.dot_dimension_numbers<[1], [0], [0], [1], [0, 0, 1, 1], [], []>} : vector<2x1024xf32>, vector<1024x512xf32>, vector<2x512xf32> -> vector<2x512xf32>
    %c0_3 = arith.constant 0 : index
    %c0_4 = arith.constant 0 : index
    %3 = vector.load %arg2[%c0_3, %c0_4] : memref<1x512xf32, #tpu.memory_space<vmem>>, vector<1x512xf32>
    %4 = vector.broadcast %3 : vector<1x512xf32> to vector<2x512xf32>
    %5 = arith.addf %2, %4 : vector<2x512xf32>
    %cst_5 = arith.constant 0.000000e+00 : f32
    %6 = vector.broadcast %cst_5 : f32 to vector<2x512xf32>
    %7 = arith.maximumf %5, %6 : vector<2x512xf32>
    %8 = vector.extract_strided_slice %7 {offsets = [0, 0], sizes = [2, 128], strides = [1, 1]} : vector<2x512xf32> to vector<2x128xf32>
    %9 = vector.extract_strided_slice %7 {offsets = [0, 128], sizes = [2, 128], strides = [1, 1]} : vector<2x512xf32> to vector<2x128xf32>
    %10 = arith.addf %8, %9 : vector<2x128xf32>
    %11 = vector.extract_strided_slice %7 {offsets = [0, 256], sizes = [2, 128], strides = [1, 1]} : vector<2x512xf32> to vector<2x128xf32>
    %12 = arith.addf %10, %11 : vector<2x128xf32>
    %13 = vector.extract_strided_slice %7 {offsets = [0, 384], sizes = [2, 128], strides = [1, 1]} : vector<2x512xf32> to vector<2x128xf32>
    %14 = arith.addf %12, %13 : vector<2x128xf32>
    %cst_6 = arith.constant 2.500000e-01 : f32
    %15 = vector.broadcast %cst_6 : f32 to vector<2x128xf32>
    %16 = arith.mulf %14, %15 : vector<2x128xf32>
    %c0_7 = arith.constant 0 : index
    %c0_8 = arith.constant 0 : index
    %17 = vector.load %arg3[%c0_7, %c0_8] : memref<128x512xf32, #tpu.memory_space<vmem>>, vector<128x512xf32>
    %cst_9 = arith.constant dense<0.000000e+00> : vector<2x512xf32>
    %18 = tpu.matmul %16, %17, %cst_9 {dimension_numbers = #tpu.dot_dimension_numbers<[1], [0], [0], [1], [0, 0, 1, 1], [], []>} : vector<2x128xf32>, vector<128x512xf32>, vector<2x512xf32> -> vector<2x512xf32>
    %c0_10 = arith.constant 0 : index
    %c0_11 = arith.constant 0 : index
    %19 = vector.load %arg4[%c0_10, %c0_11] : memref<1x512xf32, #tpu.memory_space<vmem>>, vector<1x512xf32>
    %20 = vector.broadcast %19 : vector<1x512xf32> to vector<2x512xf32>
    %21 = arith.addf %18, %20 : vector<2x512xf32>
    %cst_12 = arith.constant 0.000000e+00 : f32
    %22 = vector.broadcast %cst_12 : f32 to vector<2x512xf32>
    %23 = arith.maximumf %21, %22 : vector<2x512xf32>
    %24 = vector.extract_strided_slice %23 {offsets = [0, 0], sizes = [2, 128], strides = [1, 1]} : vector<2x512xf32> to vector<2x128xf32>
    %25 = vector.extract_strided_slice %23 {offsets = [0, 128], sizes = [2, 128], strides = [1, 1]} : vector<2x512xf32> to vector<2x128xf32>
    %26 = arith.addf %24, %25 : vector<2x128xf32>
    %27 = vector.extract_strided_slice %23 {offsets = [0, 256], sizes = [2, 128], strides = [1, 1]} : vector<2x512xf32> to vector<2x128xf32>
    %28 = arith.addf %26, %27 : vector<2x128xf32>
    %29 = vector.extract_strided_slice %23 {offsets = [0, 384], sizes = [2, 128], strides = [1, 1]} : vector<2x512xf32> to vector<2x128xf32>
    %30 = arith.addf %28, %29 : vector<2x128xf32>
    %cst_13 = arith.constant 2.500000e-01 : f32
    %31 = vector.broadcast %cst_13 : f32 to vector<2x128xf32>
    %32 = arith.mulf %30, %31 : vector<2x128xf32>
    %c0_14 = arith.constant 0 : index
    %c0_15 = arith.constant 0 : index
    %33 = vector.load %arg5[%c0_14, %c0_15] : memref<128x300xf32, #tpu.memory_space<vmem>>, vector<128x300xf32>
    %cst_16 = arith.constant dense<0.000000e+00> : vector<2x300xf32>
    %34 = tpu.matmul %32, %33, %cst_16 {dimension_numbers = #tpu.dot_dimension_numbers<[1], [0], [0], [1], [0, 0, 1, 1], [], []>} : vector<2x128xf32>, vector<128x300xf32>, vector<2x300xf32> -> vector<2x300xf32>
    %c0_17 = arith.constant 0 : index
    %c0_18 = arith.constant 0 : index
    %35 = vector.load %arg6[%c0_17, %c0_18] : memref<1x300xf32, #tpu.memory_space<vmem>>, vector<1x300xf32>
    %36 = vector.broadcast %35 : vector<1x300xf32> to vector<2x300xf32>
    %37 = arith.addf %34, %36 : vector<2x300xf32>
    %cst_19 = arith.constant 0.000000e+00 : f32
    %38 = vector.broadcast %cst_19 : f32 to vector<2x300xf32>
    %39 = arith.maximumf %37, %38 : vector<2x300xf32>
    %c0_20 = arith.constant 0 : index
    %c0_21 = arith.constant 0 : index
    %40 = vector.load %arg7[%c0_20, %c0_21] : memref<300x625xf32, #tpu.memory_space<vmem>>, vector<300x625xf32>
    %cst_22 = arith.constant dense<0.000000e+00> : vector<2x625xf32>
    %41 = tpu.matmul %39, %40, %cst_22 {dimension_numbers = #tpu.dot_dimension_numbers<[1], [0], [0], [1], [0, 0, 1, 1], [], []>} : vector<2x300xf32>, vector<300x625xf32>, vector<2x625xf32> -> vector<2x625xf32>
    %c0_23 = arith.constant 0 : index
    %c0_24 = arith.constant 0 : index
    %42 = vector.load %arg8[%c0_23, %c0_24] : memref<1x625xf32, #tpu.memory_space<vmem>>, vector<1x625xf32>
    %43 = vector.broadcast %42 : vector<1x625xf32> to vector<2x625xf32>
    %44 = arith.addf %41, %43 : vector<2x625xf32>
    %45 = math.tanh %44 : vector<2x625xf32>
    %c0_25 = arith.constant 0 : index
    %c0_26 = arith.constant 0 : index
    %46 = vector.load %arg9[%c0_25, %c0_26] : memref<2x625xf32, #tpu.memory_space<vmem>>, vector<2x625xf32>
    tpu.vector_store %arg9[%c0_25, %c0_26], %45 {strides = array<i32>} : memref<2x625xf32, #tpu.memory_space<vmem>>, vector<2x625xf32>,
    return
  }
}

</mosaic_0001>

<llo_original>
// kernel: autoencoder_forward.1
$region0: #{autoencoder_forward.1}
  #allocation0 [shape = 'u32[]', space=smem, size = 0x4, offset = 0x4, fixed_abs, tag = 'smem constant byte address 0x4 - core index']
  #allocation1 [shape = 'u32[72,128]{1,0:T(1,128)}', space=vmem, size = 0x9000, scoped, tag = 'internal scratch']
  %s0 = inlined_call_operand.vmem [shape: f32[2,1024], index: 0, kind: input, shape index: {}]
  %s1 = inlined_call_operand.hbm [shape: f32[1024,512], index: 1, kind: input, shape index: {}]
  %s2 = inlined_call_operand.hbm [shape: f32[1,512], index: 2, kind: input, shape index: {}]
  %s3 = inlined_call_operand.hbm [shape: f32[128,512], index: 3, kind: input, shape index: {}]
  %s4 = inlined_call_operand.hbm [shape: f32[1,512], index: 4, kind: input, shape index: {}]
  %s5 = inlined_call_operand.hbm [shape: f32[128,300], index: 5, kind: input, shape index: {}]
  %s6 = inlined_call_operand.hbm [shape: f32[1,300], index: 6, kind: input, shape index: {}]
  %s7 = inlined_call_operand.hbm [shape: f32[300,625], index: 7, kind: input, shape index: {}]
  %s8 = inlined_call_operand.vmem [shape: f32[1,625], index: 8, kind: input, shape index: {}]
  %s9 = inlined_call_operand.vmem [shape: f32[2,625], index: 9, kind: output, shape index: {}]
  %s10 = sld [smem:[#allocation0]]
  $region74: #{autoencoder_forward.1} parent=0
    _
  %s12 = ssub.s32 1, %s10
  %s13 = scalar_select 0, %s12, %s10
  $region1: #{autoencoder_forward.1} parent=0
    #allocation2 [shape = 'u8[2097152]{0}', space=vmem, size = 0x200000, scoped, tag = 'input window, operand 1, single buffered']
    #allocation3 [shape = 's32[1]{0}', space=sflag, size = 0x4, scoped, tag = 'scoped memory for autoencoder_forward.1']
    #allocation4 [shape = 'u8[2048]{0}', space=vmem, size = 0x800, scoped, tag = 'input window, operand 2, single buffered']
    #allocation5 [shape = 's32[1]{0}', space=sflag, size = 0x4, scoped, tag = 'scoped memory for autoencoder_forward.1']
    #allocation6 [shape = 'u8[262144]{0}', space=vmem, size = 0x40000, scoped, tag = 'input window, operand 3, single buffered']
    #allocation7 [shape = 'u8[2048]{0}', space=vmem, size = 0x800, scoped, tag = 'input window, operand 4, single buffered']
    #allocation8 [shape = 's32[1]{0}', space=sflag, size = 0x4, scoped, tag = 'scoped memory for autoencoder_forward.1']
    #allocation9 [shape = 'u8[196608]{0}', space=vmem, size = 0x30000, scoped, tag = 'input window, operand 5, single buffered']
    #allocation10 [shape = 'u8[1536]{0}', space=vmem, size = 0x800, scoped, tag = 'input window, operand 6, single buffered']
    #allocation11 [shape = 's32[1]{0}', space=sflag, size = 0x4, scoped, tag = 'scoped memory for autoencoder_forward.1']
    #allocation12 [shape = 'u8[778240]{0}', space=vmem, size = 0xbe000, scoped, tag = 'input window, operand 7, single buffered']
    %14 = vsyncpa [#allocation3], 0
    %15 = vsyncpa [#allocation5], 0
    %16 = vsyncpa [#allocation8], 0
    %17 = vsyncpa [#allocation11], 0
    // Predicated region
    $region2: #{autoencoder_forward.1} parent=1 // pred_check
      _
    $region3: #{autoencoder_forward.1} parent=1 // pred_check_branch
      %19 = sbr.rel (0) target = $region5
    $region4: #{autoencoder_forward.1} parent=1 // pred_region
      _
    $region5: #{autoencoder_forward.1} parent=1 // pred_fallthru
      _
    // Predicated region
    $region6: #{autoencoder_forward.1} parent=1 // pred_check
      _
    $region7: #{autoencoder_forward.1} parent=1 // pred_check_branch
      %21 = sbr.rel (0) target = $region9
    $region8: #{autoencoder_forward.1} parent=1 // pred_region
      %23 = vsyncadd [#allocation3], 0
      %s24 = sshll.u32 %s1, 4
      %s25 = int_to_ptr.hbm [resolvable:$true] %s24
      %s26 = sshll.u32 [#allocation2], 4
      %s27 = int_to_ptr.vmem [resolvable:$true] %s26
      %32 = dma.hbm_to_vmem [thread:$0]  %s25, 65536, %s27, [#allocation3], 512, 512, 32
    $region9: #{autoencoder_forward.1} parent=1 // pred_fallthru
      _
    // Predicated region
    $region10: #{autoencoder_forward.1} parent=1 // pred_check
      _
    $region11: #{autoencoder_forward.1} parent=1 // pred_check_branch
      %34 = sbr.rel (0) target = $region13
    $region12: #{autoencoder_forward.1} parent=1 // pred_region
      %36 = vsyncadd [#allocation5], 0
      %s38 = sshll.u32 %s2, 4
      %s39 = int_to_ptr.hbm [resolvable:$true] %s38
      %s40 = sshll.u32 [#allocation4], 4
      %s41 = int_to_ptr.vmem [resolvable:$true] %s40
      %43 = dma.hbm_to_vmem [thread:$0]  %s39, 64, %s41, [#allocation5]
    $region13: #{autoencoder_forward.1} parent=1 // pred_fallthru
      _
    // Predicated region
    $region14: #{autoencoder_forward.1} parent=1 // pred_check
      _
    $region15: #{autoencoder_forward.1} parent=1 // pred_check_branch
      %45 = sbr.rel (0) target = $region17
    $region16: #{autoencoder_forward.1} parent=1 // pred_region
      %47 = vsyncadd [#allocation5], 0
      %s48 = sshll.u32 %s3, 4
      %s49 = int_to_ptr.hbm [resolvable:$true] %s48
      %s50 = sshll.u32 [#allocation6], 4
      %s51 = int_to_ptr.vmem [resolvable:$true] %s50
      %56 = dma.hbm_to_vmem [thread:$0]  %s49, 8192, %s51, [#allocation5], 512, 512, 32
    $region17: #{autoencoder_forward.1} parent=1 // pred_fallthru
      _
    // Predicated region
    $region18: #{autoencoder_forward.1} parent=1 // pred_check
      _
    $region19: #{autoencoder_forward.1} parent=1 // pred_check_branch
      %58 = sbr.rel (0) target = $region21
    $region20: #{autoencoder_forward.1} parent=1 // pred_region
      %60 = vsyncadd [#allocation8], 0
      %s62 = sshll.u32 %s4, 4
      %s63 = int_to_ptr.hbm [resolvable:$true] %s62
      %s64 = sshll.u32 [#allocation7], 4
      %s65 = int_to_ptr.vmem [resolvable:$true] %s64
      %67 = dma.hbm_to_vmem [thread:$0]  %s63, 64, %s65, [#allocation8]
    $region21: #{autoencoder_forward.1} parent=1 // pred_fallthru
      _
    // Predicated region
    $region22: #{autoencoder_forward.1} parent=1 // pred_check
      _
    $region23: #{autoencoder_forward.1} parent=1 // pred_check_branch
      %69 = sbr.rel (0) target = $region25
    $region24: #{autoencoder_forward.1} parent=1 // pred_region
      %71 = vsyncadd [#allocation8], 0
      %s72 = sshll.u32 %s5, 4
      %s73 = int_to_ptr.hbm [resolvable:$true] %s72
      %s74 = sshll.u32 [#allocation9], 4
      %s75 = int_to_ptr.vmem [resolvable:$true] %s74
      %80 = dma.hbm_to_vmem [thread:$0]  %s73, 6144, %s75, [#allocation8], 384, 384, 24
    $region25: #{autoencoder_forward.1} parent=1 // pred_fallthru
      _
    // Predicated region
    $region26: #{autoencoder_forward.1} parent=1 // pred_check
      _
    $region27: #{autoencoder_forward.1} parent=1 // pred_check_branch
      %82 = sbr.rel (0) target = $region29
    $region28: #{autoencoder_forward.1} parent=1 // pred_region
      %84 = vsyncadd [#allocation11], 0
      %s86 = sshll.u32 %s6, 4
      %s87 = int_to_ptr.hbm [resolvable:$true] %s86
      %s88 = sshll.u32 [#allocation10], 4
      %s89 = int_to_ptr.vmem [resolvable:$true] %s88
      %91 = dma.hbm_to_vmem [thread:$0]  %s87, 48, %s89, [#allocation11]
    $region29: #{autoencoder_forward.1} parent=1 // pred_fallthru
      _
    // Predicated region
    $region30: #{autoencoder_forward.1} parent=1 // pred_check
      _
    $region31: #{autoencoder_forward.1} parent=1 // pred_check_branch
      %93 = sbr.rel (0) target = $region33
    $region32: #{autoencoder_forward.1} parent=1 // pred_region
      %95 = vsyncadd [#allocation11], 0
      %s96 = sshll.u32 %s7, 4
      %s97 = int_to_ptr.hbm [resolvable:$true] %s96
      %s98 = sshll.u32 [#allocation12], 4
      %s99 = int_to_ptr.vmem [resolvable:$true] %s98
      %104 = dma.hbm_to_vmem [thread:$0]  %s97, 24320, %s99, [#allocation11], 640, 640, 40
    $region33: #{autoencoder_forward.1} parent=1 // pred_fallthru
      _
    // Predicated region
    $region34: #{autoencoder_forward.1} parent=1 // pred_check
      _
    $region35: #{autoencoder_forward.1} parent=1 // pred_check_branch
      %106 = sbr.rel (0) target = $region37
    $region36: #{autoencoder_forward.1} parent=1 // pred_region
      _
    $region37: #{autoencoder_forward.1} parent=1 // pred_fallthru
      _
    // Predicated region
    $region38: #{autoencoder_forward.1} parent=1 // pred_check
      _
    $region39: #{autoencoder_forward.1} parent=1 // pred_check_branch
      %108 = sbr.rel (0) target = $region41
    $region40: #{autoencoder_forward.1} parent=1 // pred_region
      %110 = dma.done [#allocation3], 65536
    $region41: #{autoencoder_forward.1} parent=1 // pred_fallthru
      _
    // Predicated region
    $region42: #{autoencoder_forward.1} parent=1 // pred_check
      _
    $region43: #{autoencoder_forward.1} parent=1 // pred_check_branch
      %112 = sbr.rel (0) target = $region45
    $region44: #{autoencoder_forward.1} parent=1 // pred_region
      %114 = dma.done [#allocation5], 64
    $region45: #{autoencoder_forward.1} parent=1 // pred_fallthru
      _
    // Predicated region
    $region46: #{autoencoder_forward.1} parent=1 // pred_check
      _
    $region47: #{autoencoder_forward.1} parent=1 // pred_check_branch
      %116 = sbr.rel (0) target = $region49
    $region48: #{autoencoder_forward.1} parent=1 // pred_region
      %118 = dma.done [#allocation5], 8192
    $region49: #{autoencoder_forward.1} parent=1 // pred_fallthru
      _
    // Predicated region
    $region50: #{autoencoder_forward.1} parent=1 // pred_check
      _
    $region51: #{autoencoder_forward.1} parent=1 // pred_check_branch
      %120 = sbr.rel (0) target = $region53
    $region52: #{autoencoder_forward.1} parent=1 // pred_region
      %122 = dma.done [#allocation8], 64
    $region53: #{autoencoder_forward.1} parent=1 // pred_fallthru
      _
    // Predicated region
    $region54: #{autoencoder_forward.1} parent=1 // pred_check
      _
    $region55: #{autoencoder_forward.1} parent=1 // pred_check_branch
      %124 = sbr.rel (0) target = $region57
    $region56: #{autoencoder_forward.1} parent=1 // pred_region
      %126 = dma.done [#allocation8], 6144
    $region57: #{autoencoder_forward.1} parent=1 // pred_fallthru
      _
    // Predicated region
    $region58: #{autoencoder_forward.1} parent=1 // pred_check
      _
    $region59: #{autoencoder_forward.1} parent=1 // pred_check_branch
      %128 = sbr.rel (0) target = $region61
    $region60: #{autoencoder_forward.1} parent=1 // pred_region
      %130 = dma.done [#allocation11], 48
    $region61: #{autoencoder_forward.1} parent=1 // pred_fallthru
      _
    // Predicated region
    $region62: #{autoencoder_forward.1} parent=1 // pred_check
      _
    $region63: #{autoencoder_forward.1} parent=1 // pred_check_branch
      %132 = sbr.rel (0) target = $region65
    $region64: #{autoencoder_forward.1} parent=1 // pred_region
      %134 = dma.done [#allocation11], 24320
    $region65: #{autoencoder_forward.1} parent=1 // pred_fallthru
      _
    %v135 = vld [vmem:[%s0] sm:$0xff]
    %v136 = vld [vmem:[%s0 + $0x8] sm:$0xff]
    %v137 = vld [vmem:[#allocation2] sm:$0xff]
    %v138 = vld [vmem:[#allocation2 + $0x8] sm:$0xff]
    %v139 = vld [vmem:[#allocation2 + $0x10] sm:$0xff]
    %v140 = vld [vmem:[#allocation2 + $0x18] sm:$0xff]
    %v141 = vld [vmem:[#allocation2 + $0x20] sm:$0xff]
    %v142 = vld [vmem:[#allocation2 + $0x28] sm:$0xff]
    %v143 = vld [vmem:[#allocation2 + $0x30] sm:$0xff]
    %v144 = vld [vmem:[#allocation2 + $0x38] sm:$0xff]
    %v145 = vld [vmem:[#allocation2 + $0x40] sm:$0xff]
    %v146 = vld [vmem:[#allocation2 + $0x48] sm:$0xff]
    %v147 = vld [vmem:[#allocation2 + $0x50] sm:$0xff]
    %v148 = vld [vmem:[#allocation2 + $0x58] sm:$0xff]
    %v149 = vld [vmem:[#allocation2 + $0x60] sm:$0xff]
    %v150 = vld [vmem:[#allocation2 + $0x68] sm:$0xff]
    %v151 = vld [vmem:[#allocation2 + $0x70] sm:$0xff]
    %v152 = vld [vmem:[#allocation2 + $0x78] sm:$0xff]
    %v153 = vld [vmem:[#allocation2 + $0x80] sm:$0xff]
    %v154 = vld [vmem:[#allocation2 + $0x88] sm:$0xff]
    %v155 = vld [vmem:[#allocation2 + $0x90] sm:$0xff]
    %v156 = vld [vmem:[#allocation2 + $0x98] sm:$0xff]
    %v157 = vld [vmem:[#allocation2 + $0xa0] sm:$0xff]
    %v158 = vld [vmem:[#allocation2 + $0xa8] sm:$0xff]
    %v159 = vld [vmem:[#allocation2 + $0xb0] sm:$0xff]
    %v160 = vld [vmem:[#allocation2 + $0xb8] sm:$0xff]
    %v161 = vld [vmem:[#allocation2 + $0xc0] sm:$0xff]
    %v162 = vld [vmem:[#allocation2 + $0xc8] sm:$0xff]
    %v163 = vld [vmem:[#allocation2 + $0xd0] sm:$0xff]
    %v164 = vld [vmem:[#allocation2 + $0xd8] sm:$0xff]
    %v165 = vld [vmem:[#allocation2 + $0xe0] sm:$0xff]
    %v166 = vld [vmem:[#allocation2 + $0xe8] sm:$0xff]
    %v167 = vld [vmem:[#allocation2 + $0xf0] sm:$0xff]
    %v168 = vld [vmem:[#allocation2 + $0xf8] sm:$0xff]
    %v169 = vld [vmem:[#allocation2 + $0x100] sm:$0xff]
    %v170 = vld [vmem:[#allocation2 + $0x108] sm:$0xff]
    %v171 = vld [vmem:[#allocation2 + $0x110] sm:$0xff]
    %v172 = vld [vmem:[#allocation2 + $0x118] sm:$0xff]
    %v173 = vld [vmem:[#allocation2 + $0x120] sm:$0xff]
    %v174 = vld [vmem:[#allocation2 + $0x128] sm:$0xff]
    %v175 = vld [vmem:[#allocation2 + $0x130] sm:$0xff]
    %v176 = vld [vmem:[#allocation2 + $0x138] sm:$0xff]
    %v177 = vld [vmem:[#allocation2 + $0x140] sm:$0xff]
    %v178 = vld [vmem:[#allocation2 + $0x148] sm:$0xff]
    %v179 = vld [vmem:[#allocation2 + $0x150] sm:$0xff]
    %v180 = vld [vmem:[#allocation2 + $0x158] sm:$0xff]
    %v181 = vld [vmem:[#allocation2 + $0x160] sm:$0xff]
    %v182 = vld [vmem:[#allocation2 + $0x168] sm:$0xff]
    %v183 = vld [vmem:[#allocation2 + $0x170] sm:$0xff]
    %v184 = vld [vmem:[#allocation2 + $0x178] sm:$0xff]
    %v185 = vld [vmem:[#allocation2 + $0x180] sm:$0xff]
    %v186 = vld [vmem:[#allocation2 + $0x188] sm:$0xff]
    %v187 = vld [vmem:[#allocation2 + $0x190] sm:$0xff]
    %v188 = vld [vmem:[#allocation2 + $0x198] sm:$0xff]
    %v189 = vld [vmem:[#allocation2 + $0x1a0] sm:$0xff]
    %v190 = vld [vmem:[#allocation2 + $0x1a8] sm:$0xff]
    %v191 = vld [vmem:[#allocation2 + $0x1b0] sm:$0xff]
    %v192 = vld [vmem:[#allocation2 + $0x1b8] sm:$0xff]
    %v193 = vld [vmem:[#allocation2 + $0x1c0] sm:$0xff]
    %v194 = vld [vmem:[#allocation2 + $0x1c8] sm:$0xff]
    %v195 = vld [vmem:[#allocation2 + $0x1d0] sm:$0xff]
    %v196 = vld [vmem:[#allocation2 + $0x1d8] sm:$0xff]
    %v197 = vld [vmem:[#allocation2 + $0x1e0] sm:$0xff]
    %v198 = vld [vmem:[#allocation2 + $0x1e8] sm:$0xff]
    %v199 = vld [vmem:[#allocation2 + $0x1f0] sm:$0xff]
    %v200 = vld [vmem:[#allocation2 + $0x1f8] sm:$0xff]
    %v201 = vld [vmem:[#allocation2 + $0x200] sm:$0xff]
    %v202 = vld [vmem:[#allocation2 + $0x208] sm:$0xff]
    %v203 = vld [vmem:[#allocation2 + $0x210] sm:$0xff]
    %v204 = vld [vmem:[#allocation2 + $0x218] sm:$0xff]
    %v205 = vld [vmem:[#allocation2 + $0x220] sm:$0xff]
    %v206 = vld [vmem:[#allocation2 + $0x228] sm:$0xff]
    %v207 = vld [vmem:[#allocation2 + $0x230] sm:$0xff]
    %v208 = vld [vmem:[#allocation2 + $0x238] sm:$0xff]
    %v209 = vld [vmem:[#allocation2 + $0x240] sm:$0xff]
    %v210 = vld [vmem:[#allocation2 + $0x248] sm:$0xff]
    %v211 = vld [vmem:[#allocation2 + $0x250] sm:$0xff]
    %v212 = vld [vmem:[#allocation2 + $0x258] sm:$0xff]
    %v213 = vld [vmem:[#allocation2 + $0x260] sm:$0xff]
    %v214 = vld [vmem:[#allocation2 + $0x268] sm:$0xff]
    %v215 = vld [vmem:[#allocation2 + $0x270] sm:$0xff]
    %v216 = vld [vmem:[#allocation2 + $0x278] sm:$0xff]
    %v217 = vld [vmem:[#allocation2 + $0x280] sm:$0xff]
    %v218 = vld [vmem:[#allocation2 + $0x288] sm:$0xff]
    %v219 = vld [vmem:[#allocation2 + $0x290] sm:$0xff]
    %v220 = vld [vmem:[#allocation2 + $0x298] sm:$0xff]
    %v221 = vld [vmem:[#allocation2 + $0x2a0] sm:$0xff]
    %v222 = vld [vmem:[#allocation2 + $0x2a8] sm:$0xff]
    %v223 = vld [vmem:[#allocation2 + $0x2b0] sm:$0xff]
    %v224 = vld [vmem:[#allocation2 + $0x2b8] sm:$0xff]
    %v225 = vld [vmem:[#allocation2 + $0x2c0] sm:$0xff]
    %v226 = vld [vmem:[#allocation2 + $0x2c8] sm:$0xff]
    %v227 = vld [vmem:[#allocation2 + $0x2d0] sm:$0xff]
    %v228 = vld [vmem:[#allocation2 + $0x2d8] sm:$0xff]
    %v229 = vld [vmem:[#allocation2 + $0x2e0] sm:$0xff]
    %v230 = vld [vmem:[#allocation2 + $0x2e8] sm:$0xff]
    %v231 = vld [vmem:[#allocation2 + $0x2f0] sm:$0xff]
    %v232 = vld [vmem:[#allocation2 + $0x2f8] sm:$0xff]
    %v233 = vld [vmem:[#allocation2 + $0x300] sm:$0xff]
    %v234 = vld [vmem:[#allocation2 + $0x308] sm:$0xff]
    %v235 = vld [vmem:[#allocation2 + $0x310] sm:$0xff]
    %v236 = vld [vmem:[#allocation2 + $0x318] sm:$0xff]
    %v237 = vld [vmem:[#allocation2 + $0x320] sm:$0xff]
    %v238 = vld [vmem:[#allocation2 + $0x328] sm:$0xff]
    %v239 = vld [vmem:[#allocation2 + $0x330] sm:$0xff]
    %v240 = vld [vmem:[#allocation2 + $0x338] sm:$0xff]
    %v241 = vld [vmem:[#allocation2 + $0x340] sm:$0xff]
    %v242 = vld [vmem:[#allocation2 + $0x348] sm:$0xff]
    %v243 = vld [vmem:[#allocation2 + $0x350] sm:$0xff]
    %v244 = vld [vmem:[#allocation2 + $0x358] sm:$0xff]
    %v245 = vld [vmem:[#allocation2 + $0x360] sm:$0xff]
    %v246 = vld [vmem:[#allocation2 + $0x368] sm:$0xff]
    %v247 = vld [vmem:[#allocation2 + $0x370] sm:$0xff]
    %v248 = vld [vmem:[#allocation2 + $0x378] sm:$0xff]
    %v249 = vld [vmem:[#allocation2 + $0x380] sm:$0xff]
    %v250 = vld [vmem:[#allocation2 + $0x388] sm:$0xff]
    %v251 = vld [vmem:[#allocation2 + $0x390] sm:$0xff]
    %v252 = vld [vmem:[#allocation2 + $0x398] sm:$0xff]
    %v253 = vld [vmem:[#allocation2 + $0x3a0] sm:$0xff]
    %v254 = vld [vmem:[#allocation2 + $0x3a8] sm:$0xff]
    %v255 = vld [vmem:[#allocation2 + $0x3b0] sm:$0xff]
    %v256 = vld [vmem:[#allocation2 + $0x3b8] sm:$0xff]
    %v257 = vld [vmem:[#allocation2 + $0x3c0] sm:$0xff]
    %v258 = vld [vmem:[#allocation2 + $0x3c8] sm:$0xff]
    %v259 = vld [vmem:[#allocation2 + $0x3d0] sm:$0xff]
    %v260 = vld [vmem:[#allocation2 + $0x3d8] sm:$0xff]
    %v261 = vld [vmem:[#allocation2 + $0x3e0] sm:$0xff]
    %v262 = vld [vmem:[#allocation2 + $0x3e8] sm:$0xff]
    %v263 = vld [vmem:[#allocation2 + $0x3f0] sm:$0xff]
    %v264 = vld [vmem:[#allocation2 + $0x3f8] sm:$0xff]
    %v265 = vld [vmem:[#allocation2 + $0x400] sm:$0xff]
    %v266 = vld [vmem:[#allocation2 + $0x408] sm:$0xff]
    %v267 = vld [vmem:[#allocation2 + $0x410] sm:$0xff]
    %v268 = vld [vmem:[#allocation2 + $0x418] sm:$0xff]
    %v269 = vld [vmem:[#allocation2 + $0x420] sm:$0xff]
    %v270 = vld [vmem:[#allocation2 + $0x428] sm:$0xff]
    %v271 = vld [vmem:[#allocation2 + $0x430] sm:$0xff]
    %v272 = vld [vmem:[#allocation2 + $0x438] sm:$0xff]
    %v273 = vld [vmem:[#allocation2 + $0x440] sm:$0xff]
    %v274 = vld [vmem:[#allocation2 + $0x448] sm:$0xff]
    %v275 = vld [vmem:[#allocation2 + $0x450] sm:$0xff]
    %v276 = vld [vmem:[#allocation2 + $0x458] sm:$0xff]
    %v277 = vld [vmem:[#allocation2 + $0x460] sm:$0xff]
    %v278 = vld [vmem:[#allocation2 + $0x468] sm:$0xff]
    %v279 = vld [vmem:[#allocation2 + $0x470] sm:$0xff]
    %v280 = vld [vmem:[#allocation2 + $0x478] sm:$0xff]
    %v281 = vld [vmem:[#allocation2 + $0x480] sm:$0xff]
    %v282 = vld [vmem:[#allocation2 + $0x488] sm:$0xff]
    %v283 = vld [vmem:[#allocation2 + $0x490] sm:$0xff]
    %v284 = vld [vmem:[#allocation2 + $0x498] sm:$0xff]
    %v285 = vld [vmem:[#allocation2 + $0x4a0] sm:$0xff]
    %v286 = vld [vmem:[#allocation2 + $0x4a8] sm:$0xff]
    %v287 = vld [vmem:[#allocation2 + $0x4b0] sm:$0xff]
    %v288 = vld [vmem:[#allocation2 + $0x4b8] sm:$0xff]
    %v289 = vld [vmem:[#allocation2 + $0x4c0] sm:$0xff]
    %v290 = vld [vmem:[#allocation2 + $0x4c8] sm:$0xff]
    %v291 = vld [vmem:[#allocation2 + $0x4d0] sm:$0xff]
    %v292 = vld [vmem:[#allocation2 + $0x4d8] sm:$0xff]
    %v293 = vld [vmem:[#allocation2 + $0x4e0] sm:$0xff]
    %v294 = vld [vmem:[#allocation2 + $0x4e8] sm:$0xff]
    %v295 = vld [vmem:[#allocation2 + $0x4f0] sm:$0xff]
    %v296 = vld [vmem:[#allocation2 + $0x4f8] sm:$0xff]
    %v297 = vld [vmem:[#allocation2 + $0x500] sm:$0xff]
    %v298 = vld [vmem:[#allocation2 + $0x508] sm:$0xff]
    %v299 = vld [vmem:[#allocation2 + $0x510] sm:$0xff]
    %v300 = vld [vmem:[#allocation2 + $0x518] sm:$0xff]
    %v301 = vld [vmem:[#allocation2 + $0x520] sm:$0xff]
    %v302 = vld [vmem:[#allocation2 + $0x528] sm:$0xff]
    %v303 = vld [vmem:[#allocation2 + $0x530] sm:$0xff]
    %v304 = vld [vmem:[#allocation2 + $0x538] sm:$0xff]
    %v305 = vld [vmem:[#allocation2 + $0x540] sm:$0xff]
    %v306 = vld [vmem:[#allocation2 + $0x548] sm:$0xff]
    %v307 = vld [vmem:[#allocation2 + $0x550] sm:$0xff]
    %v308 = vld [vmem:[#allocation2 + $0x558] sm:$0xff]
    %v309 = vld [vmem:[#allocation2 + $0x560] sm:$0xff]
    %v310 = vld [vmem:[#allocation2 + $0x568] sm:$0xff]
    %v311 = vld [vmem:[#allocation2 + $0x570] sm:$0xff]
    %v312 = vld [vmem:[#allocation2 + $0x578] sm:$0xff]
    %v313 = vld [vmem:[#allocation2 + $0x580] sm:$0xff]
    %v314 = vld [vmem:[#allocation2 + $0x588] sm:$0xff]
    %v315 = vld [vmem:[#allocation2 + $0x590] sm:$0xff]
    %v316 = vld [vmem:[#allocation2 + $0x598] sm:$0xff]
    %v317 = vld [vmem:[#allocation2 + $0x5a0] sm:$0xff]
    %v318 = vld [vmem:[#allocation2 + $0x5a8] sm:$0xff]
    %v319 = vld [vmem:[#allocation2 + $0x5b0] sm:$0xff]
    %v320 = vld [vmem:[#allocation2 + $0x5b8] sm:$0xff]
    %v321 = vld [vmem:[#allocation2 + $0x5c0] sm:$0xff]
    %v322 = vld [vmem:[#allocation2 + $0x5c8] sm:$0xff]
    %v323 = vld [vmem:[#allocation2 + $0x5d0] sm:$0xff]
    %v324 = vld [vmem:[#allocation2 + $0x5d8] sm:$0xff]
    %v325 = vld [vmem:[#allocation2 + $0x5e0] sm:$0xff]
    %v326 = vld [vmem:[#allocation2 + $0x5e8] sm:$0xff]
    %v327 = vld [vmem:[#allocation2 + $0x5f0] sm:$0xff]
    %v328 = vld [vmem:[#allocation2 + $0x5f8] sm:$0xff]
    %v329 = vld [vmem:[#allocation2 + $0x600] sm:$0xff]
    %v330 = vld [vmem:[#allocation2 + $0x608] sm:$0xff]
    %v331 = vld [vmem:[#allocation2 + $0x610] sm:$0xff]
    %v332 = vld [vmem:[#allocation2 + $0x618] sm:$0xff]
    %v333 = vld [vmem:[#allocation2 + $0x620] sm:$0xff]
    %v334 = vld [vmem:[#allocation2 + $0x628] sm:$0xff]
    %v335 = vld [vmem:[#allocation2 + $0x630] sm:$0xff]
    %v336 = vld [vmem:[#allocation2 + $0x638] sm:$0xff]
    %v337 = vld [vmem:[#allocation2 + $0x640] sm:$0xff]
    %v338 = vld [vmem:[#allocation2 + $0x648] sm:$0xff]
    %v339 = vld [vmem:[#allocation2 + $0x650] sm:$0xff]
    %v340 = vld [vmem:[#allocation2 + $0x658] sm:$0xff]
    %v341 = vld [vmem:[#allocation2 + $0x660] sm:$0xff]
    %v342 = vld [vmem:[#allocation2 + $0x668] sm:$0xff]
    %v343 = vld [vmem:[#allocation2 + $0x670] sm:$0xff]
    %v344 = vld [vmem:[#allocation2 + $0x678] sm:$0xff]
    %v345 = vld [vmem:[#allocation2 + $0x680] sm:$0xff]
    %v346 = vld [vmem:[#allocation2 + $0x688] sm:$0xff]
    %v347 = vld [vmem:[#allocation2 + $0x690] sm:$0xff]
    %v348 = vld [vmem:[#allocation2 + $0x698] sm:$0xff]
    %v349 = vld [vmem:[#allocation2 + $0x6a0] sm:$0xff]
    %v350 = vld [vmem:[#allocation2 + $0x6a8] sm:$0xff]
    %v351 = vld [vmem:[#allocation2 + $0x6b0] sm:$0xff]
    %v352 = vld [vmem:[#allocation2 + $0x6b8] sm:$0xff]
    %v353 = vld [vmem:[#allocation2 + $0x6c0] sm:$0xff]
    %v354 = vld [vmem:[#allocation2 + $0x6c8] sm:$0xff]
    %v355 = vld [vmem:[#allocation2 + $0x6d0] sm:$0xff]
    %v356 = vld [vmem:[#allocation2 + $0x6d8] sm:$0xff]
    %v357 = vld [vmem:[#allocation2 + $0x6e0] sm:$0xff]
    %v358 = vld [vmem:[#allocation2 + $0x6e8] sm:$0xff]
    %v359 = vld [vmem:[#allocation2 + $0x6f0] sm:$0xff]
    %v360 = vld [vmem:[#allocation2 + $0x6f8] sm:$0xff]
    %v361 = vld [vmem:[#allocation2 + $0x700] sm:$0xff]
    %v362 = vld [vmem:[#allocation2 + $0x708] sm:$0xff]
    %v363 = vld [vmem:[#allocation2 + $0x710] sm:$0xff]
    %v364 = vld [vmem:[#allocation2 + $0x718] sm:$0xff]
    %v365 = vld [vmem:[#allocation2 + $0x720] sm:$0xff]
    %v366 = vld [vmem:[#allocation2 + $0x728] sm:$0xff]
    %v367 = vld [vmem:[#allocation2 + $0x730] sm:$0xff]
    %v368 = vld [vmem:[#allocation2 + $0x738] sm:$0xff]
    %v369 = vld [vmem:[#allocation2 + $0x740] sm:$0xff]
    %v370 = vld [vmem:[#allocation2 + $0x748] sm:$0xff]
    %v371 = vld [vmem:[#allocation2 + $0x750] sm:$0xff]
    %v372 = vld [vmem:[#allocation2 + $0x758] sm:$0xff]
    %v373 = vld [vmem:[#allocation2 + $0x760] sm:$0xff]
    %v374 = vld [vmem:[#allocation2 + $0x768] sm:$0xff]
    %v375 = vld [vmem:[#allocation2 + $0x770] sm:$0xff]
    %v376 = vld [vmem:[#allocation2 + $0x778] sm:$0xff]
    %v377 = vld [vmem:[#allocation2 + $0x780] sm:$0xff]
    %v378 = vld [vmem:[#allocation2 + $0x788] sm:$0xff]
    %v379 = vld [vmem:[#allocation2 + $0x790] sm:$0xff]
    %v380 = vld [vmem:[#allocation2 + $0x798] sm:$0xff]
    %v381 = vld [vmem:[#allocation2 + $0x7a0] sm:$0xff]
    %v382 = vld [vmem:[#allocation2 + $0x7a8] sm:$0xff]
    %v383 = vld [vmem:[#allocation2 + $0x7b0] sm:$0xff]
    %v384 = vld [vmem:[#allocation2 + $0x7b8] sm:$0xff]
    %v385 = vld [vmem:[#allocation2 + $0x7c0] sm:$0xff]
    %v386 = vld [vmem:[#allocation2 + $0x7c8] sm:$0xff]
    %v387 = vld [vmem:[#allocation2 + $0x7d0] sm:$0xff]
    %v388 = vld [vmem:[#allocation2 + $0x7d8] sm:$0xff]
    %v389 = vld [vmem:[#allocation2 + $0x7e0] sm:$0xff]
    %v390 = vld [vmem:[#allocation2 + $0x7e8] sm:$0xff]
    %v391 = vld [vmem:[#allocation2 + $0x7f0] sm:$0xff]
    %v392 = vld [vmem:[#allocation2 + $0x7f8] sm:$0xff]
    %v393 = vld [vmem:[#allocation2 + $0x800] sm:$0xff]
    %v394 = vld [vmem:[#allocation2 + $0x808] sm:$0xff]
    %v395 = vld [vmem:[#allocation2 + $0x810] sm:$0xff]
    %v396 = vld [vmem:[#allocation2 + $0x818] sm:$0xff]
    %v397 = vld [vmem:[#allocation2 + $0x820] sm:$0xff]
    %v398 = vld [vmem:[#allocation2 + $0x828] sm:$0xff]
    %v399 = vld [vmem:[#allocation2 + $0x830] sm:$0xff]
    %v400 = vld [vmem:[#allocation2 + $0x838] sm:$0xff]
    %v401 = vld [vmem:[#allocation2 + $0x840] sm:$0xff]
    %v402 = vld [vmem:[#allocation2 + $0x848] sm:$0xff]
    %v403 = vld [vmem:[#allocation2 + $0x850] sm:$0xff]
    %v404 = vld [vmem:[#allocation2 + $0x858] sm:$0xff]
    %v405 = vld [vmem:[#allocation2 + $0x860] sm:$0xff]
    %v406 = vld [vmem:[#allocation2 + $0x868] sm:$0xff]
    %v407 = vld [vmem:[#allocation2 + $0x870] sm:$0xff]
    %v408 = vld [vmem:[#allocation2 + $0x878] sm:$0xff]
    %v409 = vld [vmem:[#allocation2 + $0x880] sm:$0xff]
    %v410 = vld [vmem:[#allocation2 + $0x888] sm:$0xff]
    %v411 = vld [vmem:[#allocation2 + $0x890] sm:$0xff]
    %v412 = vld [vmem:[#allocation2 + $0x898] sm:$0xff]
    %v413 = vld [vmem:[#allocation2 + $0x8a0] sm:$0xff]
    %v414 = vld [vmem:[#allocation2 + $0x8a8] sm:$0xff]
    %v415 = vld [vmem:[#allocation2 + $0x8b0] sm:$0xff]
    %v416 = vld [vmem:[#allocation2 + $0x8b8] sm:$0xff]
    %v417 = vld [vmem:[#allocation2 + $0x8c0] sm:$0xff]
    %v418 = vld [vmem:[#allocation2 + $0x8c8] sm:$0xff]
    %v419 = vld [vmem:[#allocation2 + $0x8d0] sm:$0xff]
    %v420 = vld [vmem:[#allocation2 + $0x8d8] sm:$0xff]
    %v421 = vld [vmem:[#allocation2 + $0x8e0] sm:$0xff]
    %v422 = vld [vmem:[#allocation2 + $0x8e8] sm:$0xff]
    %v423 = vld [vmem:[#allocation2 + $0x8f0] sm:$0xff]
    %v424 = vld [vmem:[#allocation2 + $0x8f8] sm:$0xff]
    %v425 = vld [vmem:[#allocation2 + $0x900] sm:$0xff]
    %v426 = vld [vmem:[#allocation2 + $0x908] sm:$0xff]
    %v427 = vld [vmem:[#allocation2 + $0x910] sm:$0xff]
    %v428 = vld [vmem:[#allocation2 + $0x918] sm:$0xff]
    %v429 = vld [vmem:[#allocation2 + $0x920] sm:$0xff]
    %v430 = vld [vmem:[#allocation2 + $0x928] sm:$0xff]
    %v431 = vld [vmem:[#allocation2 + $0x930] sm:$0xff]
    %v432 = vld [vmem:[#allocation2 + $0x938] sm:$0xff]
    %v433 = vld [vmem:[#allocation2 + $0x940] sm:$0xff]
    %v434 = vld [vmem:[#allocation2 + $0x948] sm:$0xff]
    %v435 = vld [vmem:[#allocation2 + $0x950] sm:$0xff]
    %v436 = vld [vmem:[#allocation2 + $0x958] sm:$0xff]
    %v437 = vld [vmem:[#allocation2 + $0x960] sm:$0xff]
    %v438 = vld [vmem:[#allocation2 + $0x968] sm:$0xff]
    %v439 = vld [vmem:[#allocation2 + $0x970] sm:$0xff]
    %v440 = vld [vmem:[#allocation2 + $0x978] sm:$0xff]
    %v441 = vld [vmem:[#allocation2 + $0x980] sm:$0xff]
    %v442 = vld [vmem:[#allocation2 + $0x988] sm:$0xff]
    %v443 = vld [vmem:[#allocation2 + $0x990] sm:$0xff]
    %v444 = vld [vmem:[#allocation2 + $0x998] sm:$0xff]
    %v445 = vld [vmem:[#allocation2 + $0x9a0] sm:$0xff]
    %v446 = vld [vmem:[#allocation2 + $0x9a8] sm:$0xff]
    %v447 = vld [vmem:[#allocation2 + $0x9b0] sm:$0xff]
    %v448 = vld [vmem:[#allocation2 + $0x9b8] sm:$0xff]
    %v449 = vld [vmem:[#allocation2 + $0x9c0] sm:$0xff]
    %v450 = vld [vmem:[#allocation2 + $0x9c8] sm:$0xff]
    %v451 = vld [vmem:[#allocation2 + $0x9d0] sm:$0xff]
    %v452 = vld [vmem:[#allocation2 + $0x9d8] sm:$0xff]
    %v453 = vld [vmem:[#allocation2 + $0x9e0] sm:$0xff]
    %v454 = vld [vmem:[#allocation2 + $0x9e8] sm:$0xff]
    %v455 = vld [vmem:[#allocation2 + $0x9f0] sm:$0xff]
    %v456 = vld [vmem:[#allocation2 + $0x9f8] sm:$0xff]
    %v457 = vld [vmem:[#allocation2 + $0xa00] sm:$0xff]
    %v458 = vld [vmem:[#allocation2 + $0xa08] sm:$0xff]
    %v459 = vld [vmem:[#allocation2 + $0xa10] sm:$0xff]
    %v460 = vld [vmem:[#allocation2 + $0xa18] sm:$0xff]
    %v461 = vld [vmem:[#allocation2 + $0xa20] sm:$0xff]
    %v462 = vld [vmem:[#allocation2 + $0xa28] sm:$0xff]
    %v463 = vld [vmem:[#allocation2 + $0xa30] sm:$0xff]
    %v464 = vld [vmem:[#allocation2 + $0xa38] sm:$0xff]
    %v465 = vld [vmem:[#allocation2 + $0xa40] sm:$0xff]
    %v466 = vld [vmem:[#allocation2 + $0xa48] sm:$0xff]
    %v467 = vld [vmem:[#allocation2 + $0xa50] sm:$0xff]
    %v468 = vld [vmem:[#allocation2 + $0xa58] sm:$0xff]
    %v469 = vld [vmem:[#allocation2 + $0xa60] sm:$0xff]
    %v470 = vld [vmem:[#allocation2 + $0xa68] sm:$0xff]
    %v471 = vld [vmem:[#allocation2 + $0xa70] sm:$0xff]
    %v472 = vld [vmem:[#allocation2 + $0xa78] sm:$0xff]
    %v473 = vld [vmem:[#allocation2 + $0xa80] sm:$0xff]
    %v474 = vld [vmem:[#allocation2 + $0xa88] sm:$0xff]
    %v475 = vld [vmem:[#allocation2 + $0xa90] sm:$0xff]
    %v476 = vld [vmem:[#allocation2 + $0xa98] sm:$0xff]
    %v477 = vld [vmem:[#allocation2 + $0xaa0] sm:$0xff]
    %v478 = vld [vmem:[#allocation2 + $0xaa8] sm:$0xff]
    %v479 = vld [vmem:[#allocation2 + $0xab0] sm:$0xff]
    %v480 = vld [vmem:[#allocation2 + $0xab8] sm:$0xff]
    %v481 = vld [vmem:[#allocation2 + $0xac0] sm:$0xff]
    %v482 = vld [vmem:[#allocation2 + $0xac8] sm:$0xff]
    %v483 = vld [vmem:[#allocation2 + $0xad0] sm:$0xff]
    %v484 = vld [vmem:[#allocation2 + $0xad8] sm:$0xff]
    %v485 = vld [vmem:[#allocation2 + $0xae0] sm:$0xff]
    %v486 = vld [vmem:[#allocation2 + $0xae8] sm:$0xff]
    %v487 = vld [vmem:[#allocation2 + $0xaf0] sm:$0xff]
    %v488 = vld [vmem:[#allocation2 + $0xaf8] sm:$0xff]
    %v489 = vld [vmem:[#allocation2 + $0xb00] sm:$0xff]
    %v490 = vld [vmem:[#allocation2 + $0xb08] sm:$0xff]
    %v491 = vld [vmem:[#allocation2 + $0xb10] sm:$0xff]
    %v492 = vld [vmem:[#allocation2 + $0xb18] sm:$0xff]
    %v493 = vld [vmem:[#allocation2 + $0xb20] sm:$0xff]
    %v494 = vld [vmem:[#allocation2 + $0xb28] sm:$0xff]
    %v495 = vld [vmem:[#allocation2 + $0xb30] sm:$0xff]
    %v496 = vld [vmem:[#allocation2 + $0xb38] sm:$0xff]
    %v497 = vld [vmem:[#allocation2 + $0xb40] sm:$0xff]
    %v498 = vld [vmem:[#allocation2 + $0xb48] sm:$0xff]
    %v499 = vld [vmem:[#allocation2 + $0xb50] sm:$0xff]
    %v500 = vld [vmem:[#allocation2 + $0xb58] sm:$0xff]
    %v501 = vld [vmem:[#allocation2 + $0xb60] sm:$0xff]
    %v502 = vld [vmem:[#allocation2 + $0xb68] sm:$0xff]
    %v503 = vld [vmem:[#allocation2 + $0xb70] sm:$0xff]
    %v504 = vld [vmem:[#allocation2 + $0xb78] sm:$0xff]
    %v505 = vld [vmem:[#allocation2 + $0xb80] sm:$0xff]
    %v506 = vld [vmem:[#allocation2 + $0xb88] sm:$0xff]
    %v507 = vld [vmem:[#allocation2 + $0xb90] sm:$0xff]
    %v508 = vld [vmem:[#allocation2 + $0xb98] sm:$0xff]
    %v509 = vld [vmem:[#allocation2 + $0xba0] sm:$0xff]
    %v510 = vld [vmem:[#allocation2 + $0xba8] sm:$0xff]
    %v511 = vld [vmem:[#allocation2 + $0xbb0] sm:$0xff]
    %v512 = vld [vmem:[#allocation2 + $0xbb8] sm:$0xff]
    %v513 = vld [vmem:[#allocation2 + $0xbc0] sm:$0xff]
    %v514 = vld [vmem:[#allocation2 + $0xbc8] sm:$0xff]
    %v515 = vld [vmem:[#allocation2 + $0xbd0] sm:$0xff]
    %v516 = vld [vmem:[#allocation2 + $0xbd8] sm:$0xff]
    %v517 = vld [vmem:[#allocation2 + $0xbe0] sm:$0xff]
    %v518 = vld [vmem:[#allocation2 + $0xbe8] sm:$0xff]
    %v519 = vld [vmem:[#allocation2 + $0xbf0] sm:$0xff]
    %v520 = vld [vmem:[#allocation2 + $0xbf8] sm:$0xff]
    %v521 = vld [vmem:[#allocation2 + $0xc00] sm:$0xff]
    %v522 = vld [vmem:[#allocation2 + $0xc08] sm:$0xff]
    %v523 = vld [vmem:[#allocation2 + $0xc10] sm:$0xff]
    %v524 = vld [vmem:[#allocation2 + $0xc18] sm:$0xff]
    %v525 = vld [vmem:[#allocation2 + $0xc20] sm:$0xff]
    %v526 = vld [vmem:[#allocation2 + $0xc28] sm:$0xff]
    %v527 = vld [vmem:[#allocation2 + $0xc30] sm:$0xff]
    %v528 = vld [vmem:[#allocation2 + $0xc38] sm:$0xff]
    %v529 = vld [vmem:[#allocation2 + $0xc40] sm:$0xff]
    %v530 = vld [vmem:[#allocation2 + $0xc48] sm:$0xff]
    %v531 = vld [vmem:[#allocation2 + $0xc50] sm:$0xff]
    %v532 = vld [vmem:[#allocation2 + $0xc58] sm:$0xff]
    %v533 = vld [vmem:[#allocation2 + $0xc60] sm:$0xff]
    %v534 = vld [vmem:[#allocation2 + $0xc68] sm:$0xff]
    %v535 = vld [vmem:[#allocation2 + $0xc70] sm:$0xff]
    %v536 = vld [vmem:[#allocation2 + $0xc78] sm:$0xff]
    %v537 = vld [vmem:[#allocation2 + $0xc80] sm:$0xff]
    %v538 = vld [vmem:[#allocation2 + $0xc88] sm:$0xff]
    %v539 = vld [vmem:[#allocation2 + $0xc90] sm:$0xff]
    %v540 = vld [vmem:[#allocation2 + $0xc98] sm:$0xff]
    %v541 = vld [vmem:[#allocation2 + $0xca0] sm:$0xff]
    %v542 = vld [vmem:[#allocation2 + $0xca8] sm:$0xff]
    %v543 = vld [vmem:[#allocation2 + $0xcb0] sm:$0xff]
    %v544 = vld [vmem:[#allocation2 + $0xcb8] sm:$0xff]
    %v545 = vld [vmem:[#allocation2 + $0xcc0] sm:$0xff]
    %v546 = vld [vmem:[#allocation2 + $0xcc8] sm:$0xff]
    %v547 = vld [vmem:[#allocation2 + $0xcd0] sm:$0xff]
    %v548 = vld [vmem:[#allocation2 + $0xcd8] sm:$0xff]
    %v549 = vld [vmem:[#allocation2 + $0xce0] sm:$0xff]
    %v550 = vld [vmem:[#allocation2 + $0xce8] sm:$0xff]
    %v551 = vld [vmem:[#allocation2 + $0xcf0] sm:$0xff]
    %v552 = vld [vmem:[#allocation2 + $0xcf8] sm:$0xff]
    %v553 = vld [vmem:[#allocation2 + $0xd00] sm:$0xff]
    %v554 = vld [vmem:[#allocation2 + $0xd08] sm:$0xff]
    %v555 = vld [vmem:[#allocation2 + $0xd10] sm:$0xff]
    %v556 = vld [vmem:[#allocation2 + $0xd18] sm:$0xff]
    %v557 = vld [vmem:[#allocation2 + $0xd20] sm:$0xff]
    %v558 = vld [vmem:[#allocation2 + $0xd28] sm:$0xff]
    %v559 = vld [vmem:[#allocation2 + $0xd30] sm:$0xff]
    %v560 = vld [vmem:[#allocation2 + $0xd38] sm:$0xff]
    %v561 = vld [vmem:[#allocation2 + $0xd40] sm:$0xff]
    %v562 = vld [vmem:[#allocation2 + $0xd48] sm:$0xff]
    %v563 = vld [vmem:[#allocation2 + $0xd50] sm:$0xff]
    %v564 = vld [vmem:[#allocation2 + $0xd58] sm:$0xff]
    %v565 = vld [vmem:[#allocation2 + $0xd60] sm:$0xff]
    %v566 = vld [vmem:[#allocation2 + $0xd68] sm:$0xff]
    %v567 = vld [vmem:[#allocation2 + $0xd70] sm:$0xff]
    %v568 = vld [vmem:[#allocation2 + $0xd78] sm:$0xff]
    %v569 = vld [vmem:[#allocation2 + $0xd80] sm:$0xff]
    %v570 = vld [vmem:[#allocation2 + $0xd88] sm:$0xff]
    %v571 = vld [vmem:[#allocation2 + $0xd90] sm:$0xff]
    %v572 = vld [vmem:[#allocation2 + $0xd98] sm:$0xff]
    %v573 = vld [vmem:[#allocation2 + $0xda0] sm:$0xff]
    %v574 = vld [vmem:[#allocation2 + $0xda8] sm:$0xff]
    %v575 = vld [vmem:[#allocation2 + $0xdb0] sm:$0xff]
    %v576 = vld [vmem:[#allocation2 + $0xdb8] sm:$0xff]
    %v577 = vld [vmem:[#allocation2 + $0xdc0] sm:$0xff]
    %v578 = vld [vmem:[#allocation2 + $0xdc8] sm:$0xff]
    %v579 = vld [vmem:[#allocation2 + $0xdd0] sm:$0xff]
    %v580 = vld [vmem:[#allocation2 + $0xdd8] sm:$0xff]
    %v581 = vld [vmem:[#allocation2 + $0xde0] sm:$0xff]
    %v582 = vld [vmem:[#allocation2 + $0xde8] sm:$0xff]
    %v583 = vld [vmem:[#allocation2 + $0xdf0] sm:$0xff]
    %v584 = vld [vmem:[#allocation2 + $0xdf8] sm:$0xff]
    %v585 = vld [vmem:[#allocation2 + $0xe00] sm:$0xff]
    %v586 = vld [vmem:[#allocation2 + $0xe08] sm:$0xff]
    %v587 = vld [vmem:[#allocation2 + $0xe10] sm:$0xff]
    %v588 = vld [vmem:[#allocation2 + $0xe18] sm:$0xff]
    %v589 = vld [vmem:[#allocation2 + $0xe20] sm:$0xff]
    %v590 = vld [vmem:[#allocation2 + $0xe28] sm:$0xff]
    %v591 = vld [vmem:[#allocation2 + $0xe30] sm:$0xff]
    %v592 = vld [vmem:[#allocation2 + $0xe38] sm:$0xff]
    %v593 = vld [vmem:[#allocation2 + $0xe40] sm:$0xff]
    %v594 = vld [vmem:[#allocation2 + $0xe48] sm:$0xff]
    %v595 = vld [vmem:[#allocation2 + $0xe50] sm:$0xff]
    %v596 = vld [vmem:[#allocation2 + $0xe58] sm:$0xff]
    %v597 = vld [vmem:[#allocation2 + $0xe60] sm:$0xff]
    %v598 = vld [vmem:[#allocation2 + $0xe68] sm:$0xff]
    %v599 = vld [vmem:[#allocation2 + $0xe70] sm:$0xff]
    %v600 = vld [vmem:[#allocation2 + $0xe78] sm:$0xff]
    %v601 = vld [vmem:[#allocation2 + $0xe80] sm:$0xff]
    %v602 = vld [vmem:[#allocation2 + $0xe88] sm:$0xff]
    %v603 = vld [vmem:[#allocation2 + $0xe90] sm:$0xff]
    %v604 = vld [vmem:[#allocation2 + $0xe98] sm:$0xff]
    %v605 = vld [vmem:[#allocation2 + $0xea0] sm:$0xff]
    %v606 = vld [vmem:[#allocation2 + $0xea8] sm:$0xff]
    %v607 = vld [vmem:[#allocation2 + $0xeb0] sm:$0xff]
    %v608 = vld [vmem:[#allocation2 + $0xeb8] sm:$0xff]
    %v609 = vld [vmem:[#allocation2 + $0xec0] sm:$0xff]
    %v610 = vld [vmem:[#allocation2 + $0xec8] sm:$0xff]
    %v611 = vld [vmem:[#allocation2 + $0xed0] sm:$0xff]
    %v612 = vld [vmem:[#allocation2 + $0xed8] sm:$0xff]
    %v613 = vld [vmem:[#allocation2 + $0xee0] sm:$0xff]
    %v614 = vld [vmem:[#allocation2 + $0xee8] sm:$0xff]
    %v615 = vld [vmem:[#allocation2 + $0xef0] sm:$0xff]
    %v616 = vld [vmem:[#allocation2 + $0xef8] sm:$0xff]
    %v617 = vld [vmem:[#allocation2 + $0xf00] sm:$0xff]
    %v618 = vld [vmem:[#allocation2 + $0xf08] sm:$0xff]
    %v619 = vld [vmem:[#allocation2 + $0xf10] sm:$0xff]
    %v620 = vld [vmem:[#allocation2 + $0xf18] sm:$0xff]
    %v621 = vld [vmem:[#allocation2 + $0xf20] sm:$0xff]
    %v622 = vld [vmem:[#allocation2 + $0xf28] sm:$0xff]
    %v623 = vld [vmem:[#allocation2 + $0xf30] sm:$0xff]
    %v624 = vld [vmem:[#allocation2 + $0xf38] sm:$0xff]
    %v625 = vld [vmem:[#allocation2 + $0xf40] sm:$0xff]
    %v626 = vld [vmem:[#allocation2 + $0xf48] sm:$0xff]
    %v627 = vld [vmem:[#allocation2 + $0xf50] sm:$0xff]
    %v628 = vld [vmem:[#allocation2 + $0xf58] sm:$0xff]
    %v629 = vld [vmem:[#allocation2 + $0xf60] sm:$0xff]
    %v630 = vld [vmem:[#allocation2 + $0xf68] sm:$0xff]
    %v631 = vld [vmem:[#allocation2 + $0xf70] sm:$0xff]
    %v632 = vld [vmem:[#allocation2 + $0xf78] sm:$0xff]
    %v633 = vld [vmem:[#allocation2 + $0xf80] sm:$0xff]
    %v634 = vld [vmem:[#allocation2 + $0xf88] sm:$0xff]
    %v635 = vld [vmem:[#allocation2 + $0xf90] sm:$0xff]
    %v636 = vld [vmem:[#allocation2 + $0xf98] sm:$0xff]
    %v637 = vld [vmem:[#allocation2 + $0xfa0] sm:$0xff]
    %v638 = vld [vmem:[#allocation2 + $0xfa8] sm:$0xff]
    %v639 = vld [vmem:[#allocation2 + $0xfb0] sm:$0xff]
    %v640 = vld [vmem:[#allocation2 + $0xfb8] sm:$0xff]
    %v641 = vld [vmem:[#allocation2 + $0xfc0] sm:$0xff]
    %v642 = vld [vmem:[#allocation2 + $0xfc8] sm:$0xff]
    %v643 = vld [vmem:[#allocation2 + $0xfd0] sm:$0xff]
    %v644 = vld [vmem:[#allocation2 + $0xfd8] sm:$0xff]
    %v645 = vld [vmem:[#allocation2 + $0xfe0] sm:$0xff]
    %v646 = vld [vmem:[#allocation2 + $0xfe8] sm:$0xff]
    %v647 = vld [vmem:[#allocation2 + $0xff0] sm:$0xff]
    %v648 = vld [vmem:[#allocation2 + $0xff8] sm:$0xff]
    %v649 = vld [vmem:[#allocation4] sm:$0xf]
    %v651 = vperm.slane %v649, 0
    %v652 = vperm.slane %v649, 1
    %v653 = vperm.slane %v649, 2
    %v654 = vperm.slane %v649, 3
    %661 = vst [vmem:[#allocation1] ss:$4 sm:$0xff] %v135
    %s662 = scalar_lea.vmem [#allocation1], 32
    %663 = vst [vmem:[%s662] ss:$4 sm:$0xff] %v136
    %v664 = vld.sshfl [vmem:[#allocation1] sm:$0xff pattern:$0x73625140]
    %v665 = vld.sshfl [vmem:[#allocation1 + $0x8] sm:$0xff pattern:$0x73625140]
    %v666 = vld.sshfl [vmem:[#allocation1 + $0x10] sm:$0xff pattern:$0x73625140]
    %v667 = vld.sshfl [vmem:[#allocation1 + $0x18] sm:$0xff pattern:$0x73625140]
    %v668 = vld.sshfl [vmem:[#allocation1 + $0x20] sm:$0xff pattern:$0x73625140]
    %v669 = vld.sshfl [vmem:[#allocation1 + $0x28] sm:$0xff pattern:$0x73625140]
    %v670 = vld.sshfl [vmem:[#allocation1 + $0x30] sm:$0xff pattern:$0x73625140]
    %v671 = vld.sshfl [vmem:[#allocation1 + $0x38] sm:$0xff pattern:$0x73625140]
    %680 = vmatpush.msra.mxu0 %v197
    %681 = vmatpush.msra.mxu0 %v193
    %682 = vmatpush.msra.mxu0 %v189
    %683 = vmatpush.msra.mxu0 %v185
    %684 = vmatpush.msra.mxu0 %v181
    %685 = vmatpush.msra.mxu0 %v177
    %686 = vmatpush.msra.mxu0 %v173
    %687 = vmatpush.msra.mxu0 %v169
    %688 = vmatpush.msra.mxu0 %v165
    %689 = vmatpush.msra.mxu0 %v161
    %690 = vmatpush.msra.mxu0 %v157
    %691 = vmatpush.msra.mxu0 %v153
    %692 = vmatpush.msra.mxu0 %v149
    %693 = vmatpush.msra.mxu0 %v145
    %694 = vmatpush.msra.mxu0 %v141
    %695 = vmatpush.msra.mxu0 %v137
    %696 = vmatmul.f32.gmra.mxu0 %v664
    %v697 = vpop.f32.mrf.mxu0
    %v698 = vadd.f32 %v651, %v697
    %699 = vdwg.mxu0
    %700 = vmatpush.msra.mxu0 %v261
    %701 = vmatpush.msra.mxu0 %v257
    %702 = vmatpush.msra.mxu0 %v253
    %703 = vmatpush.msra.mxu0 %v249
    %704 = vmatpush.msra.mxu0 %v245
    %705 = vmatpush.msra.mxu0 %v241
    %706 = vmatpush.msra.mxu0 %v237
    %707 = vmatpush.msra.mxu0 %v233
    %708 = vmatpush.msra.mxu0 %v229
    %709 = vmatpush.msra.mxu0 %v225
    %710 = vmatpush.msra.mxu0 %v221
    %711 = vmatpush.msra.mxu0 %v217
    %712 = vmatpush.msra.mxu0 %v213
    %713 = vmatpush.msra.mxu0 %v209
    %714 = vmatpush.msra.mxu0 %v205
    %715 = vmatpush.msra.mxu0 %v201
    %716 = vmatmul.f32.gmra.mxu0 %v665
    %v717 = vpop.f32.mrf.mxu0
    %v718 = vadd.f32 %v698, %v717
    %719 = vdwg.mxu0
    %720 = vmatpush.msra.mxu0 %v325
    %721 = vmatpush.msra.mxu0 %v321
    %722 = vmatpush.msra.mxu0 %v317
    %723 = vmatpush.msra.mxu0 %v313
    %724 = vmatpush.msra.mxu0 %v309
    %725 = vmatpush.msra.mxu0 %v305
    %726 = vmatpush.msra.mxu0 %v301
    %727 = vmatpush.msra.mxu0 %v297
    %728 = vmatpush.msra.mxu0 %v293
    %729 = vmatpush.msra.mxu0 %v289
    %730 = vmatpush.msra.mxu0 %v285
    %731 = vmatpush.msra.mxu0 %v281
    %732 = vmatpush.msra.mxu0 %v277
    %733 = vmatpush.msra.mxu0 %v273
    %734 = vmatpush.msra.mxu0 %v269
    %735 = vmatpush.msra.mxu0 %v265
    %736 = vmatmul.f32.gmra.mxu0 %v666
    %v737 = vpop.f32.mrf.mxu0
    %v738 = vadd.f32 %v718, %v737
    %739 = vdwg.mxu0
    %740 = vmatpush.msra.mxu0 %v389
    %741 = vmatpush.msra.mxu0 %v385
    %742 = vmatpush.msra.mxu0 %v381
    %743 = vmatpush.msra.mxu0 %v377
    %744 = vmatpush.msra.mxu0 %v373
    %745 = vmatpush.msra.mxu0 %v369
    %746 = vmatpush.msra.mxu0 %v365
    %747 = vmatpush.msra.mxu0 %v361
    %748 = vmatpush.msra.mxu0 %v357
    %749 = vmatpush.msra.mxu0 %v353
    %750 = vmatpush.msra.mxu0 %v349
    %751 = vmatpush.msra.mxu0 %v345
    %752 = vmatpush.msra.mxu0 %v341
    %753 = vmatpush.msra.mxu0 %v337
    %754 = vmatpush.msra.mxu0 %v333
    %755 = vmatpush.msra.mxu0 %v329
    %756 = vmatmul.f32.gmra.mxu0 %v667
    %v757 = vpop.f32.mrf.mxu0
    %v758 = vadd.f32 %v738, %v757
    %759 = vdwg.mxu0
    %760 = vmatpush.msra.mxu0 %v453
    %761 = vmatpush.msra.mxu0 %v449
    %762 = vmatpush.msra.mxu0 %v445
    %763 = vmatpush.msra.mxu0 %v441
    %764 = vmatpush.msra.mxu0 %v437
    %765 = vmatpush.msra.mxu0 %v433
    %766 = vmatpush.msra.mxu0 %v429
    %767 = vmatpush.msra.mxu0 %v425
    %768 = vmatpush.msra.mxu0 %v421
    %769 = vmatpush.msra.mxu0 %v417
    %770 = vmatpush.msra.mxu0 %v413
    %771 = vmatpush.msra.mxu0 %v409
    %772 = vmatpush.msra.mxu0 %v405
    %773 = vmatpush.msra.mxu0 %v401
    %774 = vmatpush.msra.mxu0 %v397
    %775 = vmatpush.msra.mxu0 %v393
    %776 = vmatmul.f32.gmra.mxu0 %v668
    %v777 = vpop.f32.mrf.mxu0
    %v778 = vadd.f32 %v758, %v777
    %779 = vdwg.mxu0
    %780 = vmatpush.msra.mxu0 %v517
    %781 = vmatpush.msra.mxu0 %v513
    %782 = vmatpush.msra.mxu0 %v509
    %783 = vmatpush.msra.mxu0 %v505
    %784 = vmatpush.msra.mxu0 %v501
    %785 = vmatpush.msra.mxu0 %v497
    %786 = vmatpush.msra.mxu0 %v493
    %787 = vmatpush.msra.mxu0 %v489
    %788 = vmatpush.msra.mxu0 %v485
    %789 = vmatpush.msra.mxu0 %v481
    %790 = vmatpush.msra.mxu0 %v477
    %791 = vmatpush.msra.mxu0 %v473
    %792 = vmatpush.msra.mxu0 %v469
    %793 = vmatpush.msra.mxu0 %v465
    %794 = vmatpush.msra.mxu0 %v461
    %795 = vmatpush.msra.mxu0 %v457
    %796 = vmatmul.f32.gmra.mxu0 %v669
    %v797 = vpop.f32.mrf.mxu0
    %v798 = vadd.f32 %v778, %v797
    %799 = vdwg.mxu0
    %800 = vmatpush.msra.mxu0 %v581
    %801 = vmatpush.msra.mxu0 %v577
    %802 = vmatpush.msra.mxu0 %v573
    %803 = vmatpush.msra.mxu0 %v569
    %804 = vmatpush.msra.mxu0 %v565
    %805 = vmatpush.msra.mxu0 %v561
    %806 = vmatpush.msra.mxu0 %v557
    %807 = vmatpush.msra.mxu0 %v553
    %808 = vmatpush.msra.mxu0 %v549
    %809 = vmatpush.msra.mxu0 %v545
    %810 = vmatpush.msra.mxu0 %v541
    %811 = vmatpush.msra.mxu0 %v537
    %812 = vmatpush.msra.mxu0 %v533
    %813 = vmatpush.msra.mxu0 %v529
    %814 = vmatpush.msra.mxu0 %v525
    %815 = vmatpush.msra.mxu0 %v521
    %816 = vmatmul.f32.gmra.mxu0 %v670
    %v817 = vpop.f32.mrf.mxu0
    %v818 = vadd.f32 %v798, %v817
    %819 = vdwg.mxu0
    %820 = vmatpush.msra.mxu0 %v645
    %821 = vmatpush.msra.mxu0 %v641
    %822 = vmatpush.msra.mxu0 %v637
    %823 = vmatpush.msra.mxu0 %v633
    %824 = vmatpush.msra.mxu0 %v629
    %825 = vmatpush.msra.mxu0 %v625
    %826 = vmatpush.msra.mxu0 %v621
    %827 = vmatpush.msra.mxu0 %v617
    %828 = vmatpush.msra.mxu0 %v613
    %829 = vmatpush.msra.mxu0 %v609
    %830 = vmatpush.msra.mxu0 %v605
    %831 = vmatpush.msra.mxu0 %v601
    %832 = vmatpush.msra.mxu0 %v597
    %833 = vmatpush.msra.mxu0 %v593
    %834 = vmatpush.msra.mxu0 %v589
    %835 = vmatpush.msra.mxu0 %v585
    %836 = vmatmul.f32.gmra.mxu0 %v671
    %v837 = vpop.f32.mrf.mxu0
    %v838 = vadd.f32 %v818, %v837
    %839 = vdwg.mxu0
    %840 = vmatpush.msra.mxu0 %v198
    %841 = vmatpush.msra.mxu0 %v194
    %842 = vmatpush.msra.mxu0 %v190
    %843 = vmatpush.msra.mxu0 %v186
    %844 = vmatpush.msra.mxu0 %v182
    %845 = vmatpush.msra.mxu0 %v178
    %846 = vmatpush.msra.mxu0 %v174
    %847 = vmatpush.msra.mxu0 %v170
    %848 = vmatpush.msra.mxu0 %v166
    %849 = vmatpush.msra.mxu0 %v162
    %850 = vmatpush.msra.mxu0 %v158
    %851 = vmatpush.msra.mxu0 %v154
    %852 = vmatpush.msra.mxu0 %v150
    %853 = vmatpush.msra.mxu0 %v146
    %854 = vmatpush.msra.mxu0 %v142
    %855 = vmatpush.msra.mxu0 %v138
    %856 = vmatmul.f32.gmra.mxu0 %v664
    %v857 = vpop.f32.mrf.mxu0
    %v858 = vadd.f32 %v652, %v857
    %859 = vdwg.mxu0
    %860 = vmatpush.msra.mxu0 %v262
    %861 = vmatpush.msra.mxu0 %v258
    %862 = vmatpush.msra.mxu0 %v254
    %863 = vmatpush.msra.mxu0 %v250
    %864 = vmatpush.msra.mxu0 %v246
    %865 = vmatpush.msra.mxu0 %v242
    %866 = vmatpush.msra.mxu0 %v238
    %867 = vmatpush.msra.mxu0 %v234
    %868 = vmatpush.msra.mxu0 %v230
    %869 = vmatpush.msra.mxu0 %v226
    %870 = vmatpush.msra.mxu0 %v222
    %871 = vmatpush.msra.mxu0 %v218
    %872 = vmatpush.msra.mxu0 %v214
    %873 = vmatpush.msra.mxu0 %v210
    %874 = vmatpush.msra.mxu0 %v206
    %875 = vmatpush.msra.mxu0 %v202
    %876 = vmatmul.f32.gmra.mxu0 %v665
    %v877 = vpop.f32.mrf.mxu0
    %v878 = vadd.f32 %v858, %v877
    %879 = vdwg.mxu0
    %880 = vmatpush.msra.mxu0 %v326
    %881 = vmatpush.msra.mxu0 %v322
    %882 = vmatpush.msra.mxu0 %v318
    %883 = vmatpush.msra.mxu0 %v314
    %884 = vmatpush.msra.mxu0 %v310
    %885 = vmatpush.msra.mxu0 %v306
    %886 = vmatpush.msra.mxu0 %v302
    %887 = vmatpush.msra.mxu0 %v298
    %888 = vmatpush.msra.mxu0 %v294
    %889 = vmatpush.msra.mxu0 %v290
    %890 = vmatpush.msra.mxu0 %v286
    %891 = vmatpush.msra.mxu0 %v282
    %892 = vmatpush.msra.mxu0 %v278
    %893 = vmatpush.msra.mxu0 %v274
    %894 = vmatpush.msra.mxu0 %v270
    %895 = vmatpush.msra.mxu0 %v266
    %896 = vmatmul.f32.gmra.mxu0 %v666
    %v897 = vpop.f32.mrf.mxu0
    %v898 = vadd.f32 %v878, %v897
    %899 = vdwg.mxu0
    %900 = vmatpush.msra.mxu0 %v390
    %901 = vmatpush.msra.mxu0 %v386
    %902 = vmatpush.msra.mxu0 %v382
    %903 = vmatpush.msra.mxu0 %v378
    %904 = vmatpush.msra.mxu0 %v374
    %905 = vmatpush.msra.mxu0 %v370
    %906 = vmatpush.msra.mxu0 %v366
    %907 = vmatpush.msra.mxu0 %v362
    %908 = vmatpush.msra.mxu0 %v358
    %909 = vmatpush.msra.mxu0 %v354
    %910 = vmatpush.msra.mxu0 %v350
    %911 = vmatpush.msra.mxu0 %v346
    %912 = vmatpush.msra.mxu0 %v342
    %913 = vmatpush.msra.mxu0 %v338
    %914 = vmatpush.msra.mxu0 %v334
    %915 = vmatpush.msra.mxu0 %v330
    %916 = vmatmul.f32.gmra.mxu0 %v667
    %v917 = vpop.f32.mrf.mxu0
    %v918 = vadd.f32 %v898, %v917
    %919 = vdwg.mxu0
    %920 = vmatpush.msra.mxu0 %v454
    %921 = vmatpush.msra.mxu0 %v450
    %922 = vmatpush.msra.mxu0 %v446
    %923 = vmatpush.msra.mxu0 %v442
    %924 = vmatpush.msra.mxu0 %v438
    %925 = vmatpush.msra.mxu0 %v434
    %926 = vmatpush.msra.mxu0 %v430
    %927 = vmatpush.msra.mxu0 %v426
    %928 = vmatpush.msra.mxu0 %v422
    %929 = vmatpush.msra.mxu0 %v418
    %930 = vmatpush.msra.mxu0 %v414
    %931 = vmatpush.msra.mxu0 %v410
    %932 = vmatpush.msra.mxu0 %v406
    %933 = vmatpush.msra.mxu0 %v402
    %934 = vmatpush.msra.mxu0 %v398
    %935 = vmatpush.msra.mxu0 %v394
    %936 = vmatmul.f32.gmra.mxu0 %v668
    %v937 = vpop.f32.mrf.mxu0
    %v938 = vadd.f32 %v918, %v937
    %939 = vdwg.mxu0
    %940 = vmatpush.msra.mxu0 %v518
    %941 = vmatpush.msra.mxu0 %v514
    %942 = vmatpush.msra.mxu0 %v510
    %943 = vmatpush.msra.mxu0 %v506
    %944 = vmatpush.msra.mxu0 %v502
    %945 = vmatpush.msra.mxu0 %v498
    %946 = vmatpush.msra.mxu0 %v494
    %947 = vmatpush.msra.mxu0 %v490
    %948 = vmatpush.msra.mxu0 %v486
    %949 = vmatpush.msra.mxu0 %v482
    %950 = vmatpush.msra.mxu0 %v478
    %951 = vmatpush.msra.mxu0 %v474
    %952 = vmatpush.msra.mxu0 %v470
    %953 = vmatpush.msra.mxu0 %v466
    %954 = vmatpush.msra.mxu0 %v462
    %955 = vmatpush.msra.mxu0 %v458
    %956 = vmatmul.f32.gmra.mxu0 %v669
    %v957 = vpop.f32.mrf.mxu0
    %v958 = vadd.f32 %v938, %v957
    %959 = vdwg.mxu0
    %960 = vmatpush.msra.mxu0 %v582
    %961 = vmatpush.msra.mxu0 %v578
    %962 = vmatpush.msra.mxu0 %v574
    %963 = vmatpush.msra.mxu0 %v570
    %964 = vmatpush.msra.mxu0 %v566
    %965 = vmatpush.msra.mxu0 %v562
    %966 = vmatpush.msra.mxu0 %v558
    %967 = vmatpush.msra.mxu0 %v554
    %968 = vmatpush.msra.mxu0 %v550
    %969 = vmatpush.msra.mxu0 %v546
    %970 = vmatpush.msra.mxu0 %v542
    %971 = vmatpush.msra.mxu0 %v538
    %972 = vmatpush.msra.mxu0 %v534
    %973 = vmatpush.msra.mxu0 %v530
    %974 = vmatpush.msra.mxu0 %v526
    %975 = vmatpush.msra.mxu0 %v522
    %976 = vmatmul.f32.gmra.mxu0 %v670
    %v977 = vpop.f32.mrf.mxu0
    %v978 = vadd.f32 %v958, %v977
    %979 = vdwg.mxu0
    %980 = vmatpush.msra.mxu0 %v646
    %981 = vmatpush.msra.mxu0 %v642
    %982 = vmatpush.msra.mxu0 %v638
    %983 = vmatpush.msra.mxu0 %v634
    %984 = vmatpush.msra.mxu0 %v630
    %985 = vmatpush.msra.mxu0 %v626
    %986 = vmatpush.msra.mxu0 %v622
    %987 = vmatpush.msra.mxu0 %v618
    %988 = vmatpush.msra.mxu0 %v614
    %989 = vmatpush.msra.mxu0 %v610
    %990 = vmatpush.msra.mxu0 %v606
    %991 = vmatpush.msra.mxu0 %v602
    %992 = vmatpush.msra.mxu0 %v598
    %993 = vmatpush.msra.mxu0 %v594
    %994 = vmatpush.msra.mxu0 %v590
    %995 = vmatpush.msra.mxu0 %v586
    %996 = vmatmul.f32.gmra.mxu0 %v671
    %v997 = vpop.f32.mrf.mxu0
    %v998 = vadd.f32 %v978, %v997
    %999 = vdwg.mxu0
    %1000 = vmatpush.msra.mxu0 %v199
    %1001 = vmatpush.msra.mxu0 %v195
    %1002 = vmatpush.msra.mxu0 %v191
    %1003 = vmatpush.msra.mxu0 %v187
    %1004 = vmatpush.msra.mxu0 %v183
    %1005 = vmatpush.msra.mxu0 %v179
    %1006 = vmatpush.msra.mxu0 %v175
    %1007 = vmatpush.msra.mxu0 %v171
    %1008 = vmatpush.msra.mxu0 %v167
    %1009 = vmatpush.msra.mxu0 %v163
    %1010 = vmatpush.msra.mxu0 %v159
    %1011 = vmatpush.msra.mxu0 %v155
    %1012 = vmatpush.msra.mxu0 %v151
    %1013 = vmatpush.msra.mxu0 %v147
    %1014 = vmatpush.msra.mxu0 %v143
    %1015 = vmatpush.msra.mxu0 %v139
    %1016 = vmatmul.f32.gmra.mxu0 %v664
    %v1017 = vpop.f32.mrf.mxu0
    %v1018 = vadd.f32 %v653, %v1017
    %1019 = vdwg.mxu0
    %1020 = vmatpush.msra.mxu0 %v263
    %1021 = vmatpush.msra.mxu0 %v259
    %1022 = vmatpush.msra.mxu0 %v255
    %1023 = vmatpush.msra.mxu0 %v251
    %1024 = vmatpush.msra.mxu0 %v247
    %1025 = vmatpush.msra.mxu0 %v243
    %1026 = vmatpush.msra.mxu0 %v239
    %1027 = vmatpush.msra.mxu0 %v235
    %1028 = vmatpush.msra.mxu0 %v231
    %1029 = vmatpush.msra.mxu0 %v227
    %1030 = vmatpush.msra.mxu0 %v223
    %1031 = vmatpush.msra.mxu0 %v219
    %1032 = vmatpush.msra.mxu0 %v215
    %1033 = vmatpush.msra.mxu0 %v211
    %1034 = vmatpush.msra.mxu0 %v207
    %1035 = vmatpush.msra.mxu0 %v203
    %1036 = vmatmul.f32.gmra.mxu0 %v665
    %v1037 = vpop.f32.mrf.mxu0
    %v1038 = vadd.f32 %v1018, %v1037
    %1039 = vdwg.mxu0
    %1040 = vmatpush.msra.mxu0 %v327
    %1041 = vmatpush.msra.mxu0 %v323
    %1042 = vmatpush.msra.mxu0 %v319
    %1043 = vmatpush.msra.mxu0 %v315
    %1044 = vmatpush.msra.mxu0 %v311
    %1045 = vmatpush.msra.mxu0 %v307
    %1046 = vmatpush.msra.mxu0 %v303
    %1047 = vmatpush.msra.mxu0 %v299
    %1048 = vmatpush.msra.mxu0 %v295
    %1049 = vmatpush.msra.mxu0 %v291
    %1050 = vmatpush.msra.mxu0 %v287
    %1051 = vmatpush.msra.mxu0 %v283
    %1052 = vmatpush.msra.mxu0 %v279
    %1053 = vmatpush.msra.mxu0 %v275
    %1054 = vmatpush.msra.mxu0 %v271
    %1055 = vmatpush.msra.mxu0 %v267
    %1056 = vmatmul.f32.gmra.mxu0 %v666
    %v1057 = vpop.f32.mrf.mxu0
    %v1058 = vadd.f32 %v1038, %v1057
    %1059 = vdwg.mxu0
    %1060 = vmatpush.msra.mxu0 %v391
    %1061 = vmatpush.msra.mxu0 %v387
    %1062 = vmatpush.msra.mxu0 %v383
    %1063 = vmatpush.msra.mxu0 %v379
    %1064 = vmatpush.msra.mxu0 %v375
    %1065 = vmatpush.msra.mxu0 %v371
    %1066 = vmatpush.msra.mxu0 %v367
    %1067 = vmatpush.msra.mxu0 %v363
    %1068 = vmatpush.msra.mxu0 %v359
    %1069 = vmatpush.msra.mxu0 %v355
    %1070 = vmatpush.msra.mxu0 %v351
    %1071 = vmatpush.msra.mxu0 %v347
    %1072 = vmatpush.msra.mxu0 %v343
    %1073 = vmatpush.msra.mxu0 %v339
    %1074 = vmatpush.msra.mxu0 %v335
    %1075 = vmatpush.msra.mxu0 %v331
    %1076 = vmatmul.f32.gmra.mxu0 %v667
    %v1077 = vpop.f32.mrf.mxu0
    %v1078 = vadd.f32 %v1058, %v1077
    %1079 = vdwg.mxu0
    %1080 = vmatpush.msra.mxu0 %v455
    %1081 = vmatpush.msra.mxu0 %v451
    %1082 = vmatpush.msra.mxu0 %v447
    %1083 = vmatpush.msra.mxu0 %v443
    %1084 = vmatpush.msra.mxu0 %v439
    %1085 = vmatpush.msra.mxu0 %v435
    %1086 = vmatpush.msra.mxu0 %v431
    %1087 = vmatpush.msra.mxu0 %v427
    %1088 = vmatpush.msra.mxu0 %v423
    %1089 = vmatpush.msra.mxu0 %v419
    %1090 = vmatpush.msra.mxu0 %v415
    %1091 = vmatpush.msra.mxu0 %v411
    %1092 = vmatpush.msra.mxu0 %v407
    %1093 = vmatpush.msra.mxu0 %v403
    %1094 = vmatpush.msra.mxu0 %v399
    %1095 = vmatpush.msra.mxu0 %v395
    %1096 = vmatmul.f32.gmra.mxu0 %v668
    %v1097 = vpop.f32.mrf.mxu0
    %v1098 = vadd.f32 %v1078, %v1097
    %1099 = vdwg.mxu0
    %1100 = vmatpush.msra.mxu0 %v519
    %1101 = vmatpush.msra.mxu0 %v515
    %1102 = vmatpush.msra.mxu0 %v511
    %1103 = vmatpush.msra.mxu0 %v507
    %1104 = vmatpush.msra.mxu0 %v503
    %1105 = vmatpush.msra.mxu0 %v499
    %1106 = vmatpush.msra.mxu0 %v495
    %1107 = vmatpush.msra.mxu0 %v491
    %1108 = vmatpush.msra.mxu0 %v487
    %1109 = vmatpush.msra.mxu0 %v483
    %1110 = vmatpush.msra.mxu0 %v479
    %1111 = vmatpush.msra.mxu0 %v475
    %1112 = vmatpush.msra.mxu0 %v471
    %1113 = vmatpush.msra.mxu0 %v467
    %1114 = vmatpush.msra.mxu0 %v463
    %1115 = vmatpush.msra.mxu0 %v459
    %1116 = vmatmul.f32.gmra.mxu0 %v669
    %v1117 = vpop.f32.mrf.mxu0
    %v1118 = vadd.f32 %v1098, %v1117
    %1119 = vdwg.mxu0
    %1120 = vmatpush.msra.mxu0 %v583
    %1121 = vmatpush.msra.mxu0 %v579
    %1122 = vmatpush.msra.mxu0 %v575
    %1123 = vmatpush.msra.mxu0 %v571
    %1124 = vmatpush.msra.mxu0 %v567
    %1125 = vmatpush.msra.mxu0 %v563
    %1126 = vmatpush.msra.mxu0 %v559
    %1127 = vmatpush.msra.mxu0 %v555
    %1128 = vmatpush.msra.mxu0 %v551
    %1129 = vmatpush.msra.mxu0 %v547
    %1130 = vmatpush.msra.mxu0 %v543
    %1131 = vmatpush.msra.mxu0 %v539
    %1132 = vmatpush.msra.mxu0 %v535
    %1133 = vmatpush.msra.mxu0 %v531
    %1134 = vmatpush.msra.mxu0 %v527
    %1135 = vmatpush.msra.mxu0 %v523
    %1136 = vmatmul.f32.gmra.mxu0 %v670
    %v1137 = vpop.f32.mrf.mxu0
    %v1138 = vadd.f32 %v1118, %v1137
    %1139 = vdwg.mxu0
    %1140 = vmatpush.msra.mxu0 %v647
    %1141 = vmatpush.msra.mxu0 %v643
    %1142 = vmatpush.msra.mxu0 %v639
    %1143 = vmatpush.msra.mxu0 %v635
    %1144 = vmatpush.msra.mxu0 %v631
    %1145 = vmatpush.msra.mxu0 %v627
    %1146 = vmatpush.msra.mxu0 %v623
    %1147 = vmatpush.msra.mxu0 %v619
    %1148 = vmatpush.msra.mxu0 %v615
    %1149 = vmatpush.msra.mxu0 %v611
    %1150 = vmatpush.msra.mxu0 %v607
    %1151 = vmatpush.msra.mxu0 %v603
    %1152 = vmatpush.msra.mxu0 %v599
    %1153 = vmatpush.msra.mxu0 %v595
    %1154 = vmatpush.msra.mxu0 %v591
    %1155 = vmatpush.msra.mxu0 %v587
    %1156 = vmatmul.f32.gmra.mxu0 %v671
    %v1157 = vpop.f32.mrf.mxu0
    %v1158 = vadd.f32 %v1138, %v1157
    %1159 = vdwg.mxu0
    %1160 = vmatpush.msra.mxu0 %v200
    %1161 = vmatpush.msra.mxu0 %v196
    %1162 = vmatpush.msra.mxu0 %v192
    %1163 = vmatpush.msra.mxu0 %v188
    %1164 = vmatpush.msra.mxu0 %v184
    %1165 = vmatpush.msra.mxu0 %v180
    %1166 = vmatpush.msra.mxu0 %v176
    %1167 = vmatpush.msra.mxu0 %v172
    %1168 = vmatpush.msra.mxu0 %v168
    %1169 = vmatpush.msra.mxu0 %v164
    %1170 = vmatpush.msra.mxu0 %v160
    %1171 = vmatpush.msra.mxu0 %v156
    %1172 = vmatpush.msra.mxu0 %v152
    %1173 = vmatpush.msra.mxu0 %v148
    %1174 = vmatpush.msra.mxu0 %v144
    %1175 = vmatpush.msra.mxu0 %v140
    %1176 = vmatmul.f32.gmra.mxu0 %v664
    %v1177 = vpop.f32.mrf.mxu0
    %v1178 = vadd.f32 %v654, %v1177
    %1179 = vdwg.mxu0
    %1180 = vmatpush.msra.mxu0 %v264
    %1181 = vmatpush.msra.mxu0 %v260
    %1182 = vmatpush.msra.mxu0 %v256
    %1183 = vmatpush.msra.mxu0 %v252
    %1184 = vmatpush.msra.mxu0 %v248
    %1185 = vmatpush.msra.mxu0 %v244
    %1186 = vmatpush.msra.mxu0 %v240
    %1187 = vmatpush.msra.mxu0 %v236
    %1188 = vmatpush.msra.mxu0 %v232
    %1189 = vmatpush.msra.mxu0 %v228
    %1190 = vmatpush.msra.mxu0 %v224
    %1191 = vmatpush.msra.mxu0 %v220
    %1192 = vmatpush.msra.mxu0 %v216
    %1193 = vmatpush.msra.mxu0 %v212
    %1194 = vmatpush.msra.mxu0 %v208
    %1195 = vmatpush.msra.mxu0 %v204
    %1196 = vmatmul.f32.gmra.mxu0 %v665
    %v1197 = vpop.f32.mrf.mxu0
    %v1198 = vadd.f32 %v1178, %v1197
    %1199 = vdwg.mxu0
    %1200 = vmatpush.msra.mxu0 %v328
    %1201 = vmatpush.msra.mxu0 %v324
    %1202 = vmatpush.msra.mxu0 %v320
    %1203 = vmatpush.msra.mxu0 %v316
    %1204 = vmatpush.msra.mxu0 %v312
    %1205 = vmatpush.msra.mxu0 %v308
    %1206 = vmatpush.msra.mxu0 %v304
    %1207 = vmatpush.msra.mxu0 %v300
    %1208 = vmatpush.msra.mxu0 %v296
    %1209 = vmatpush.msra.mxu0 %v292
    %1210 = vmatpush.msra.mxu0 %v288
    %1211 = vmatpush.msra.mxu0 %v284
    %1212 = vmatpush.msra.mxu0 %v280
    %1213 = vmatpush.msra.mxu0 %v276
    %1214 = vmatpush.msra.mxu0 %v272
    %1215 = vmatpush.msra.mxu0 %v268
    %1216 = vmatmul.f32.gmra.mxu0 %v666
    %v1217 = vpop.f32.mrf.mxu0
    %v1218 = vadd.f32 %v1198, %v1217
    %1219 = vdwg.mxu0
    %1220 = vmatpush.msra.mxu0 %v392
    %1221 = vmatpush.msra.mxu0 %v388
    %1222 = vmatpush.msra.mxu0 %v384
    %1223 = vmatpush.msra.mxu0 %v380
    %1224 = vmatpush.msra.mxu0 %v376
    %1225 = vmatpush.msra.mxu0 %v372
    %1226 = vmatpush.msra.mxu0 %v368
    %1227 = vmatpush.msra.mxu0 %v364
    %1228 = vmatpush.msra.mxu0 %v360
    %1229 = vmatpush.msra.mxu0 %v356
    %1230 = vmatpush.msra.mxu0 %v352
    %1231 = vmatpush.msra.mxu0 %v348
    %1232 = vmatpush.msra.mxu0 %v344
    %1233 = vmatpush.msra.mxu0 %v340
    %1234 = vmatpush.msra.mxu0 %v336
    %1235 = vmatpush.msra.mxu0 %v332
    %1236 = vmatmul.f32.gmra.mxu0 %v667
    %v1237 = vpop.f32.mrf.mxu0
    %v1238 = vadd.f32 %v1218, %v1237
    %1239 = vdwg.mxu0
    %1240 = vmatpush.msra.mxu0 %v456
    %1241 = vmatpush.msra.mxu0 %v452
    %1242 = vmatpush.msra.mxu0 %v448
    %1243 = vmatpush.msra.mxu0 %v444
    %1244 = vmatpush.msra.mxu0 %v440
    %1245 = vmatpush.msra.mxu0 %v436
    %1246 = vmatpush.msra.mxu0 %v432
    %1247 = vmatpush.msra.mxu0 %v428
    %1248 = vmatpush.msra.mxu0 %v424
    %1249 = vmatpush.msra.mxu0 %v420
    %1250 = vmatpush.msra.mxu0 %v416
    %1251 = vmatpush.msra.mxu0 %v412
    %1252 = vmatpush.msra.mxu0 %v408
    %1253 = vmatpush.msra.mxu0 %v404
    %1254 = vmatpush.msra.mxu0 %v400
    %1255 = vmatpush.msra.mxu0 %v396
    %1256 = vmatmul.f32.gmra.mxu0 %v668
    %v1257 = vpop.f32.mrf.mxu0
    %v1258 = vadd.f32 %v1238, %v1257
    %1259 = vdwg.mxu0
    %1260 = vmatpush.msra.mxu0 %v520
    %1261 = vmatpush.msra.mxu0 %v516
    %1262 = vmatpush.msra.mxu0 %v512
    %1263 = vmatpush.msra.mxu0 %v508
    %1264 = vmatpush.msra.mxu0 %v504
    %1265 = vmatpush.msra.mxu0 %v500
    %1266 = vmatpush.msra.mxu0 %v496
    %1267 = vmatpush.msra.mxu0 %v492
    %1268 = vmatpush.msra.mxu0 %v488
    %1269 = vmatpush.msra.mxu0 %v484
    %1270 = vmatpush.msra.mxu0 %v480
    %1271 = vmatpush.msra.mxu0 %v476
    %1272 = vmatpush.msra.mxu0 %v472
    %1273 = vmatpush.msra.mxu0 %v468
    %1274 = vmatpush.msra.mxu0 %v464
    %1275 = vmatpush.msra.mxu0 %v460
    %1276 = vmatmul.f32.gmra.mxu0 %v669
    %v1277 = vpop.f32.mrf.mxu0
    %v1278 = vadd.f32 %v1258, %v1277
    %1279 = vdwg.mxu0
    %1280 = vmatpush.msra.mxu0 %v584
    %1281 = vmatpush.msra.mxu0 %v580
    %1282 = vmatpush.msra.mxu0 %v576
    %1283 = vmatpush.msra.mxu0 %v572
    %1284 = vmatpush.msra.mxu0 %v568
    %1285 = vmatpush.msra.mxu0 %v564
    %1286 = vmatpush.msra.mxu0 %v560
    %1287 = vmatpush.msra.mxu0 %v556
    %1288 = vmatpush.msra.mxu0 %v552
    %1289 = vmatpush.msra.mxu0 %v548
    %1290 = vmatpush.msra.mxu0 %v544
    %1291 = vmatpush.msra.mxu0 %v540
    %1292 = vmatpush.msra.mxu0 %v536
    %1293 = vmatpush.msra.mxu0 %v532
    %1294 = vmatpush.msra.mxu0 %v528
    %1295 = vmatpush.msra.mxu0 %v524
    %1296 = vmatmul.f32.gmra.mxu0 %v670
    %v1297 = vpop.f32.mrf.mxu0
    %v1298 = vadd.f32 %v1278, %v1297
    %1299 = vdwg.mxu0
    %1300 = vmatpush.msra.mxu0 %v648
    %1301 = vmatpush.msra.mxu0 %v644
    %1302 = vmatpush.msra.mxu0 %v640
    %1303 = vmatpush.msra.mxu0 %v636
    %1304 = vmatpush.msra.mxu0 %v632
    %1305 = vmatpush.msra.mxu0 %v628
    %1306 = vmatpush.msra.mxu0 %v624
    %1307 = vmatpush.msra.mxu0 %v620
    %1308 = vmatpush.msra.mxu0 %v616
    %1309 = vmatpush.msra.mxu0 %v612
    %1310 = vmatpush.msra.mxu0 %v608
    %1311 = vmatpush.msra.mxu0 %v604
    %1312 = vmatpush.msra.mxu0 %v600
    %1313 = vmatpush.msra.mxu0 %v596
    %1314 = vmatpush.msra.mxu0 %v592
    %1315 = vmatpush.msra.mxu0 %v588
    %1316 = vmatmul.f32.gmra.mxu0 %v671
    %v1317 = vpop.f32.mrf.mxu0
    %v1318 = vadd.f32 %v1298, %v1317
    %1319 = vdwg.mxu0
    %v1320 = vmax.f32 %v838, 0.0
    %v1321 = vmax.f32 %v998, 0.0
    %v1322 = vmax.f32 %v1158, 0.0
    %v1323 = vmax.f32 %v1318, 0.0
    %v1324 = vadd.f32 %v1320, %v1321
    %v1325 = vadd.f32 %v1324, %v1322
    %v1326 = vadd.f32 %v1325, %v1323
    %v1327 = vmul.f32 %v1326, 0.25
    %v1328 = vld [vmem:[#allocation6] sm:$0xff]
    %v1329 = vld [vmem:[#allocation6 + $0x8] sm:$0xff]
    %v1330 = vld [vmem:[#allocation6 + $0x10] sm:$0xff]
    %v1331 = vld [vmem:[#allocation6 + $0x18] sm:$0xff]
    %v1332 = vld [vmem:[#allocation6 + $0x20] sm:$0xff]
    %v1333 = vld [vmem:[#allocation6 + $0x28] sm:$0xff]
    %v1334 = vld [vmem:[#allocation6 + $0x30] sm:$0xff]
    %v1335 = vld [vmem:[#allocation6 + $0x38] sm:$0xff]
    %v1336 = vld [vmem:[#allocation6 + $0x40] sm:$0xff]
    %v1337 = vld [vmem:[#allocation6 + $0x48] sm:$0xff]
    %v1338 = vld [vmem:[#allocation6 + $0x50] sm:$0xff]
    %v1339 = vld [vmem:[#allocation6 + $0x58] sm:$0xff]
    %v1340 = vld [vmem:[#allocation6 + $0x60] sm:$0xff]
    %v1341 = vld [vmem:[#allocation6 + $0x68] sm:$0xff]
    %v1342 = vld [vmem:[#allocation6 + $0x70] sm:$0xff]
    %v1343 = vld [vmem:[#allocation6 + $0x78] sm:$0xff]
    %v1344 = vld [vmem:[#allocation6 + $0x80] sm:$0xff]
    %v1345 = vld [vmem:[#allocation6 + $0x88] sm:$0xff]
    %v1346 = vld [vmem:[#allocation6 + $0x90] sm:$0xff]
    %v1347 = vld [vmem:[#allocation6 + $0x98] sm:$0xff]
    %v1348 = vld [vmem:[#allocation6 + $0xa0] sm:$0xff]
    %v1349 = vld [vmem:[#allocation6 + $0xa8] sm:$0xff]
    %v1350 = vld [vmem:[#allocation6 + $0xb0] sm:$0xff]
    %v1351 = vld [vmem:[#allocation6 + $0xb8] sm:$0xff]
    %v1352 = vld [vmem:[#allocation6 + $0xc0] sm:$0xff]
    %v1353 = vld [vmem:[#allocation6 + $0xc8] sm:$0xff]
    %v1354 = vld [vmem:[#allocation6 + $0xd0] sm:$0xff]
    %v1355 = vld [vmem:[#allocation6 + $0xd8] sm:$0xff]
    %v1356 = vld [vmem:[#allocation6 + $0xe0] sm:$0xff]
    %v1357 = vld [vmem:[#allocation6 + $0xe8] sm:$0xff]
    %v1358 = vld [vmem:[#allocation6 + $0xf0] sm:$0xff]
    %v1359 = vld [vmem:[#allocation6 + $0xf8] sm:$0xff]
    %v1360 = vld [vmem:[#allocation6 + $0x100] sm:$0xff]
    %v1361 = vld [vmem:[#allocation6 + $0x108] sm:$0xff]
    %v1362 = vld [vmem:[#allocation6 + $0x110] sm:$0xff]
    %v1363 = vld [vmem:[#allocation6 + $0x118] sm:$0xff]
    %v1364 = vld [vmem:[#allocation6 + $0x120] sm:$0xff]
    %v1365 = vld [vmem:[#allocation6 + $0x128] sm:$0xff]
    %v1366 = vld [vmem:[#allocation6 + $0x130] sm:$0xff]
    %v1367 = vld [vmem:[#allocation6 + $0x138] sm:$0xff]
    %v1368 = vld [vmem:[#allocation6 + $0x140] sm:$0xff]
    %v1369 = vld [vmem:[#allocation6 + $0x148] sm:$0xff]
    %v1370 = vld [vmem:[#allocation6 + $0x150] sm:$0xff]
    %v1371 = vld [vmem:[#allocation6 + $0x158] sm:$0xff]
    %v1372 = vld [vmem:[#allocation6 + $0x160] sm:$0xff]
    %v1373 = vld [vmem:[#allocation6 + $0x168] sm:$0xff]
    %v1374 = vld [vmem:[#allocation6 + $0x170] sm:$0xff]
    %v1375 = vld [vmem:[#allocation6 + $0x178] sm:$0xff]
    %v1376 = vld [vmem:[#allocation6 + $0x180] sm:$0xff]
    %v1377 = vld [vmem:[#allocation6 + $0x188] sm:$0xff]
    %v1378 = vld [vmem:[#allocation6 + $0x190] sm:$0xff]
    %v1379 = vld [vmem:[#allocation6 + $0x198] sm:$0xff]
    %v1380 = vld [vmem:[#allocation6 + $0x1a0] sm:$0xff]
    %v1381 = vld [vmem:[#allocation6 + $0x1a8] sm:$0xff]
    %v1382 = vld [vmem:[#allocation6 + $0x1b0] sm:$0xff]
    %v1383 = vld [vmem:[#allocation6 + $0x1b8] sm:$0xff]
    %v1384 = vld [vmem:[#allocation6 + $0x1c0] sm:$0xff]
    %v1385 = vld [vmem:[#allocation6 + $0x1c8] sm:$0xff]
    %v1386 = vld [vmem:[#allocation6 + $0x1d0] sm:$0xff]
    %v1387 = vld [vmem:[#allocation6 + $0x1d8] sm:$0xff]
    %v1388 = vld [vmem:[#allocation6 + $0x1e0] sm:$0xff]
    %v1389 = vld [vmem:[#allocation6 + $0x1e8] sm:$0xff]
    %v1390 = vld [vmem:[#allocation6 + $0x1f0] sm:$0xff]
    %v1391 = vld [vmem:[#allocation6 + $0x1f8] sm:$0xff]
    %v1392 = vld [vmem:[#allocation7] sm:$0xf]
    %v1394 = vperm.slane %v1392, 0
    %v1395 = vperm.slane %v1392, 1
    %v1396 = vperm.slane %v1392, 2
    %v1397 = vperm.slane %v1392, 3
    %1402 = vmatpush.msra.mxu0 %v1388
    %1403 = vmatpush.msra.mxu0 %v1384
    %1404 = vmatpush.msra.mxu0 %v1380
    %1405 = vmatpush.msra.mxu0 %v1376
    %1406 = vmatpush.msra.mxu0 %v1372
    %1407 = vmatpush.msra.mxu0 %v1368
    %1408 = vmatpush.msra.mxu0 %v1364
    %1409 = vmatpush.msra.mxu0 %v1360
    %1410 = vmatpush.msra.mxu0 %v1356
    %1411 = vmatpush.msra.mxu0 %v1352
    %1412 = vmatpush.msra.mxu0 %v1348
    %1413 = vmatpush.msra.mxu0 %v1344
    %1414 = vmatpush.msra.mxu0 %v1340
    %1415 = vmatpush.msra.mxu0 %v1336
    %1416 = vmatpush.msra.mxu0 %v1332
    %1417 = vmatpush.msra.mxu0 %v1328
    %1418 = vmatmul.f32.gmra.mxu0 %v1327
    %v1419 = vpop.f32.mrf.mxu0
    %v1420 = vadd.f32 %v1394, %v1419
    %1421 = vdwg.mxu0
    %1422 = vmatpush.msra.mxu0 %v1389
    %1423 = vmatpush.msra.mxu0 %v1385
    %1424 = vmatpush.msra.mxu0 %v1381
    %1425 = vmatpush.msra.mxu0 %v1377
    %1426 = vmatpush.msra.mxu0 %v1373
    %1427 = vmatpush.msra.mxu0 %v1369
    %1428 = vmatpush.msra.mxu0 %v1365
    %1429 = vmatpush.msra.mxu0 %v1361
    %1430 = vmatpush.msra.mxu0 %v1357
    %1431 = vmatpush.msra.mxu0 %v1353
    %1432 = vmatpush.msra.mxu0 %v1349
    %1433 = vmatpush.msra.mxu0 %v1345
    %1434 = vmatpush.msra.mxu0 %v1341
    %1435 = vmatpush.msra.mxu0 %v1337
    %1436 = vmatpush.msra.mxu0 %v1333
    %1437 = vmatpush.msra.mxu0 %v1329
    %1438 = vmatmul.f32.gmra.mxu0 %v1327
    %v1439 = vpop.f32.mrf.mxu0
    %v1440 = vadd.f32 %v1395, %v1439
    %1441 = vdwg.mxu0
    %1442 = vmatpush.msra.mxu0 %v1390
    %1443 = vmatpush.msra.mxu0 %v1386
    %1444 = vmatpush.msra.mxu0 %v1382
    %1445 = vmatpush.msra.mxu0 %v1378
    %1446 = vmatpush.msra.mxu0 %v1374
    %1447 = vmatpush.msra.mxu0 %v1370
    %1448 = vmatpush.msra.mxu0 %v1366
    %1449 = vmatpush.msra.mxu0 %v1362
    %1450 = vmatpush.msra.mxu0 %v1358
    %1451 = vmatpush.msra.mxu0 %v1354
    %1452 = vmatpush.msra.mxu0 %v1350
    %1453 = vmatpush.msra.mxu0 %v1346
    %1454 = vmatpush.msra.mxu0 %v1342
    %1455 = vmatpush.msra.mxu0 %v1338
    %1456 = vmatpush.msra.mxu0 %v1334
    %1457 = vmatpush.msra.mxu0 %v1330
    %1458 = vmatmul.f32.gmra.mxu0 %v1327
    %v1459 = vpop.f32.mrf.mxu0
    %v1460 = vadd.f32 %v1396, %v1459
    %1461 = vdwg.mxu0
    %1462 = vmatpush.msra.mxu0 %v1391
    %1463 = vmatpush.msra.mxu0 %v1387
    %1464 = vmatpush.msra.mxu0 %v1383
    %1465 = vmatpush.msra.mxu0 %v1379
    %1466 = vmatpush.msra.mxu0 %v1375
    %1467 = vmatpush.msra.mxu0 %v1371
    %1468 = vmatpush.msra.mxu0 %v1367
    %1469 = vmatpush.msra.mxu0 %v1363
    %1470 = vmatpush.msra.mxu0 %v1359
    %1471 = vmatpush.msra.mxu0 %v1355
    %1472 = vmatpush.msra.mxu0 %v1351
    %1473 = vmatpush.msra.mxu0 %v1347
    %1474 = vmatpush.msra.mxu0 %v1343
    %1475 = vmatpush.msra.mxu0 %v1339
    %1476 = vmatpush.msra.mxu0 %v1335
    %1477 = vmatpush.msra.mxu0 %v1331
    %1478 = vmatmul.f32.gmra.mxu0 %v1327
    %v1479 = vpop.f32.mrf.mxu0
    %v1480 = vadd.f32 %v1397, %v1479
    %1481 = vdwg.mxu0
    %v1482 = vmax.f32 %v1420, 0.0
    %v1483 = vmax.f32 %v1440, 0.0
    %v1484 = vmax.f32 %v1460, 0.0
    %v1485 = vmax.f32 %v1480, 0.0
    %v1486 = vadd.f32 %v1482, %v1483
    %v1487 = vadd.f32 %v1486, %v1484
    %v1488 = vadd.f32 %v1487, %v1485
    %v1489 = vmul.f32 %v1488, 0.25
    %v1490 = vld [vmem:[#allocation9] sm:$0xff]
    %v1491 = vld [vmem:[#allocation9 + $0x8] sm:$0xff]
    %v1492 = vld [vmem:[#allocation9 + $0x10] sm:$0xff]
    %v1493 = vld [vmem:[#allocation9 + $0x18] sm:$0xff]
    %v1494 = vld [vmem:[#allocation9 + $0x20] sm:$0xff]
    %v1495 = vld [vmem:[#allocation9 + $0x28] sm:$0xff]
    %v1496 = vld [vmem:[#allocation9 + $0x30] sm:$0xff]
    %v1497 = vld [vmem:[#allocation9 + $0x38] sm:$0xff]
    %v1498 = vld [vmem:[#allocation9 + $0x40] sm:$0xff]
    %v1499 = vld [vmem:[#allocation9 + $0x48] sm:$0xff]
    %v1500 = vld [vmem:[#allocation9 + $0x50] sm:$0xff]
    %v1501 = vld [vmem:[#allocation9 + $0x58] sm:$0xff]
    %v1502 = vld [vmem:[#allocation9 + $0x60] sm:$0xff]
    %v1503 = vld [vmem:[#allocation9 + $0x68] sm:$0xff]
    %v1504 = vld [vmem:[#allocation9 + $0x70] sm:$0xff]
    %v1505 = vld [vmem:[#allocation9 + $0x78] sm:$0xff]
    %v1506 = vld [vmem:[#allocation9 + $0x80] sm:$0xff]
    %v1507 = vld [vmem:[#allocation9 + $0x88] sm:$0xff]
    %v1508 = vld [vmem:[#allocation9 + $0x90] sm:$0xff]
    %v1509 = vld [vmem:[#allocation9 + $0x98] sm:$0xff]
    %v1510 = vld [vmem:[#allocation9 + $0xa0] sm:$0xff]
    %v1511 = vld [vmem:[#allocation9 + $0xa8] sm:$0xff]
    %v1512 = vld [vmem:[#allocation9 + $0xb0] sm:$0xff]
    %v1513 = vld [vmem:[#allocation9 + $0xb8] sm:$0xff]
    %v1514 = vld [vmem:[#allocation9 + $0xc0] sm:$0xff]
    %v1515 = vld [vmem:[#allocation9 + $0xc8] sm:$0xff]
    %v1516 = vld [vmem:[#allocation9 + $0xd0] sm:$0xff]
    %v1517 = vld [vmem:[#allocation9 + $0xd8] sm:$0xff]
    %v1518 = vld [vmem:[#allocation9 + $0xe0] sm:$0xff]
    %v1519 = vld [vmem:[#allocation9 + $0xe8] sm:$0xff]
    %v1520 = vld [vmem:[#allocation9 + $0xf0] sm:$0xff]
    %v1521 = vld [vmem:[#allocation9 + $0xf8] sm:$0xff]
    %v1522 = vld [vmem:[#allocation9 + $0x100] sm:$0xff]
    %v1523 = vld [vmem:[#allocation9 + $0x108] sm:$0xff]
    %v1524 = vld [vmem:[#allocation9 + $0x110] sm:$0xff]
    %v1525 = vld [vmem:[#allocation9 + $0x118] sm:$0xff]
    %v1526 = vld [vmem:[#allocation9 + $0x120] sm:$0xff]
    %v1527 = vld [vmem:[#allocation9 + $0x128] sm:$0xff]
    %v1528 = vld [vmem:[#allocation9 + $0x130] sm:$0xff]
    %v1529 = vld [vmem:[#allocation9 + $0x138] sm:$0xff]
    %v1530 = vld [vmem:[#allocation9 + $0x140] sm:$0xff]
    %v1531 = vld [vmem:[#allocation9 + $0x148] sm:$0xff]
    %v1532 = vld [vmem:[#allocation9 + $0x150] sm:$0xff]
    %v1533 = vld [vmem:[#allocation9 + $0x158] sm:$0xff]
    %v1534 = vld [vmem:[#allocation9 + $0x160] sm:$0xff]
    %v1535 = vld [vmem:[#allocation9 + $0x168] sm:$0xff]
    %v1536 = vld [vmem:[#allocation9 + $0x170] sm:$0xff]
    %v1537 = vld [vmem:[#allocation9 + $0x178] sm:$0xff]
    %v1538 = vld [vmem:[#allocation10] sm:$0x7]
    %v1540 = vperm.slane %v1538, 0
    %v1541 = vperm.slane %v1538, 1
    %v1542 = vperm.slane %v1538, 2
    %1546 = vmatpush.msra.mxu0 %v1535
    %1547 = vmatpush.msra.mxu0 %v1532
    %1548 = vmatpush.msra.mxu0 %v1529
    %1549 = vmatpush.msra.mxu0 %v1526
    %1550 = vmatpush.msra.mxu0 %v1523
    %1551 = vmatpush.msra.mxu0 %v1520
    %1552 = vmatpush.msra.mxu0 %v1517
    %1553 = vmatpush.msra.mxu0 %v1514
    %1554 = vmatpush.msra.mxu0 %v1511
    %1555 = vmatpush.msra.mxu0 %v1508
    %1556 = vmatpush.msra.mxu0 %v1505
    %1557 = vmatpush.msra.mxu0 %v1502
    %1558 = vmatpush.msra.mxu0 %v1499
    %1559 = vmatpush.msra.mxu0 %v1496
    %1560 = vmatpush.msra.mxu0 %v1493
    %1561 = vmatpush.msra.mxu0 %v1490
    %1562 = vmatmul.f32.gmra.mxu0 %v1489
    %v1563 = vpop.f32.mrf.mxu0
    %v1564 = vadd.f32 %v1540, %v1563
    %1565 = vdwg.mxu0
    %1566 = vmatpush.msra.mxu0 %v1536
    %1567 = vmatpush.msra.mxu0 %v1533
    %1568 = vmatpush.msra.mxu0 %v1530
    %1569 = vmatpush.msra.mxu0 %v1527
    %1570 = vmatpush.msra.mxu0 %v1524
    %1571 = vmatpush.msra.mxu0 %v1521
    %1572 = vmatpush.msra.mxu0 %v1518
    %1573 = vmatpush.msra.mxu0 %v1515
    %1574 = vmatpush.msra.mxu0 %v1512
    %1575 = vmatpush.msra.mxu0 %v1509
    %1576 = vmatpush.msra.mxu0 %v1506
    %1577 = vmatpush.msra.mxu0 %v1503
    %1578 = vmatpush.msra.mxu0 %v1500
    %1579 = vmatpush.msra.mxu0 %v1497
    %1580 = vmatpush.msra.mxu0 %v1494
    %1581 = vmatpush.msra.mxu0 %v1491
    %1582 = vmatmul.f32.gmra.mxu0 %v1489
    %v1583 = vpop.f32.mrf.mxu0
    %v1584 = vadd.f32 %v1541, %v1583
    %1585 = vdwg.mxu0
    %1586 = vmatpush.msra.mxu0 %v1537
    %1587 = vmatpush.msra.mxu0 %v1534
    %1588 = vmatpush.msra.mxu0 %v1531
    %1589 = vmatpush.msra.mxu0 %v1528
    %1590 = vmatpush.msra.mxu0 %v1525
    %1591 = vmatpush.msra.mxu0 %v1522
    %1592 = vmatpush.msra.mxu0 %v1519
    %1593 = vmatpush.msra.mxu0 %v1516
    %1594 = vmatpush.msra.mxu0 %v1513
    %1595 = vmatpush.msra.mxu0 %v1510
    %1596 = vmatpush.msra.mxu0 %v1507
    %1597 = vmatpush.msra.mxu0 %v1504
    %1598 = vmatpush.msra.mxu0 %v1501
    %1599 = vmatpush.msra.mxu0 %v1498
    %1600 = vmatpush.msra.mxu0 %v1495
    %1601 = vmatpush.msra.mxu0 %v1492
    %1602 = vmatmul.f32.gmra.mxu0 %v1489
    %v1603 = vpop.f32.mrf.mxu0
    %v1604 = vadd.f32 %v1542, %v1603
    %1605 = vdwg.mxu0
    %v1606 = vmax.f32 %v1564, 0.0
    %v1607 = vmax.f32 %v1584, 0.0
    %v1608 = vmax.f32 %v1604, 0.0
    %v1609 = vld [vmem:[#allocation12] sm:$0xff]
    %v1610 = vld [vmem:[#allocation12 + $0x8] sm:$0xff]
    %v1611 = vld [vmem:[#allocation12 + $0x10] sm:$0xff]
    %v1612 = vld [vmem:[#allocation12 + $0x18] sm:$0xff]
    %v1613 = vld [vmem:[#allocation12 + $0x20] sm:$0xff]
    %v1614 = vld [vmem:[#allocation12 + $0x28] sm:$0xff]
    %v1615 = vld [vmem:[#allocation12 + $0x30] sm:$0xff]
    %v1616 = vld [vmem:[#allocation12 + $0x38] sm:$0xff]
    %v1617 = vld [vmem:[#allocation12 + $0x40] sm:$0xff]
    %v1618 = vld [vmem:[#allocation12 + $0x48] sm:$0xff]
    %v1619 = vld [vmem:[#allocation12 + $0x50] sm:$0xff]
    %v1620 = vld [vmem:[#allocation12 + $0x58] sm:$0xff]
    %v1621 = vld [vmem:[#allocation12 + $0x60] sm:$0xff]
    %v1622 = vld [vmem:[#allocation12 + $0x68] sm:$0xff]
    %v1623 = vld [vmem:[#allocation12 + $0x70] sm:$0xff]
    %v1624 = vld [vmem:[#allocation12 + $0x78] sm:$0xff]
    %v1625 = vld [vmem:[#allocation12 + $0x80] sm:$0xff]
    %v1626 = vld [vmem:[#allocation12 + $0x88] sm:$0xff]
    %v1627 = vld [vmem:[#allocation12 + $0x90] sm:$0xff]
    %v1628 = vld [vmem:[#allocation12 + $0x98] sm:$0xff]
    %v1629 = vld [vmem:[#allocation12 + $0xa0] sm:$0xff]
    %v1630 = vld [vmem:[#allocation12 + $0xa8] sm:$0xff]
    %v1631 = vld [vmem:[#allocation12 + $0xb0] sm:$0xff]
    %v1632 = vld [vmem:[#allocation12 + $0xb8] sm:$0xff]
    %v1633 = vld [vmem:[#allocation12 + $0xc0] sm:$0xff]
    %v1634 = vld [vmem:[#allocation12 + $0xc8] sm:$0xff]
    %v1635 = vld [vmem:[#allocation12 + $0xd0] sm:$0xff]
    %v1636 = vld [vmem:[#allocation12 + $0xd8] sm:$0xff]
    %v1637 = vld [vmem:[#allocation12 + $0xe0] sm:$0xff]
    %v1638 = vld [vmem:[#allocation12 + $0xe8] sm:$0xff]
    %v1639 = vld [vmem:[#allocation12 + $0xf0] sm:$0xff]
    %v1640 = vld [vmem:[#allocation12 + $0xf8] sm:$0xff]
    %v1641 = vld [vmem:[#allocation12 + $0x100] sm:$0xff]
    %v1642 = vld [vmem:[#allocation12 + $0x108] sm:$0xff]
    %v1643 = vld [vmem:[#allocation12 + $0x110] sm:$0xff]
    %v1644 = vld [vmem:[#allocation12 + $0x118] sm:$0xff]
    %v1645 = vld [vmem:[#allocation12 + $0x120] sm:$0xff]
    %v1646 = vld [vmem:[#allocation12 + $0x128] sm:$0xff]
    %v1647 = vld [vmem:[#allocation12 + $0x130] sm:$0xff]
    %v1648 = vld [vmem:[#allocation12 + $0x138] sm:$0xff]
    %v1649 = vld [vmem:[#allocation12 + $0x140] sm:$0xff]
    %v1650 = vld [vmem:[#allocation12 + $0x148] sm:$0xff]
    %v1651 = vld [vmem:[#allocation12 + $0x150] sm:$0xff]
    %v1652 = vld [vmem:[#allocation12 + $0x158] sm:$0xff]
    %v1653 = vld [vmem:[#allocation12 + $0x160] sm:$0xff]
    %v1654 = vld [vmem:[#allocation12 + $0x168] sm:$0xff]
    %v1655 = vld [vmem:[#allocation12 + $0x170] sm:$0xff]
    %v1656 = vld [vmem:[#allocation12 + $0x178] sm:$0xff]
    %v1657 = vld [vmem:[#allocation12 + $0x180] sm:$0xff]
    %v1658 = vld [vmem:[#allocation12 + $0x188] sm:$0xff]
    %v1659 = vld [vmem:[#allocation12 + $0x190] sm:$0xff]
    %v1660 = vld [vmem:[#allocation12 + $0x198] sm:$0xff]
    %v1661 = vld [vmem:[#allocation12 + $0x1a0] sm:$0xff]
    %v1662 = vld [vmem:[#allocation12 + $0x1a8] sm:$0xff]
    %v1663 = vld [vmem:[#allocation12 + $0x1b0] sm:$0xff]
    %v1664 = vld [vmem:[#allocation12 + $0x1b8] sm:$0xff]
    %v1665 = vld [vmem:[#allocation12 + $0x1c0] sm:$0xff]
    %v1666 = vld [vmem:[#allocation12 + $0x1c8] sm:$0xff]
    %v1667 = vld [vmem:[#allocation12 + $0x1d0] sm:$0xff]
    %v1668 = vld [vmem:[#allocation12 + $0x1d8] sm:$0xff]
    %v1669 = vld [vmem:[#allocation12 + $0x1e0] sm:$0xff]
    %v1670 = vld [vmem:[#allocation12 + $0x1e8] sm:$0xff]
    %v1671 = vld [vmem:[#allocation12 + $0x1f0] sm:$0xff]
    %v1672 = vld [vmem:[#allocation12 + $0x1f8] sm:$0xff]
    %v1673 = vld [vmem:[#allocation12 + $0x200] sm:$0xff]
    %v1674 = vld [vmem:[#allocation12 + $0x208] sm:$0xff]
    %v1675 = vld [vmem:[#allocation12 + $0x210] sm:$0xff]
    %v1676 = vld [vmem:[#allocation12 + $0x218] sm:$0xff]
    %v1677 = vld [vmem:[#allocation12 + $0x220] sm:$0xff]
    %v1678 = vld [vmem:[#allocation12 + $0x228] sm:$0xff]
    %v1679 = vld [vmem:[#allocation12 + $0x230] sm:$0xff]
    %v1680 = vld [vmem:[#allocation12 + $0x238] sm:$0xff]
    %v1681 = vld [vmem:[#allocation12 + $0x240] sm:$0xff]
    %v1682 = vld [vmem:[#allocation12 + $0x248] sm:$0xff]
    %v1683 = vld [vmem:[#allocation12 + $0x250] sm:$0xff]
    %v1684 = vld [vmem:[#allocation12 + $0x258] sm:$0xff]
    %v1685 = vld [vmem:[#allocation12 + $0x260] sm:$0xff]
    %v1686 = vld [vmem:[#allocation12 + $0x268] sm:$0xff]
    %v1687 = vld [vmem:[#allocation12 + $0x270] sm:$0xff]
    %v1688 = vld [vmem:[#allocation12 + $0x278] sm:$0xff]
    %v1689 = vld [vmem:[#allocation12 + $0x280] sm:$0xff]
    %v1690 = vld [vmem:[#allocation12 + $0x288] sm:$0xff]
    %v1691 = vld [vmem:[#allocation12 + $0x290] sm:$0xff]
    %v1692 = vld [vmem:[#allocation12 + $0x298] sm:$0xff]
    %v1693 = vld [vmem:[#allocation12 + $0x2a0] sm:$0xff]
    %v1694 = vld [vmem:[#allocation12 + $0x2a8] sm:$0xff]
    %v1695 = vld [vmem:[#allocation12 + $0x2b0] sm:$0xff]
    %v1696 = vld [vmem:[#allocation12 + $0x2b8] sm:$0xff]
    %v1697 = vld [vmem:[#allocation12 + $0x2c0] sm:$0xff]
    %v1698 = vld [vmem:[#allocation12 + $0x2c8] sm:$0xff]
    %v1699 = vld [vmem:[#allocation12 + $0x2d0] sm:$0xff]
    %v1700 = vld [vmem:[#allocation12 + $0x2d8] sm:$0xff]
    %v1701 = vld [vmem:[#allocation12 + $0x2e0] sm:$0xff]
    %v1702 = vld [vmem:[#allocation12 + $0x2e8] sm:$0xff]
    %v1703 = vld [vmem:[#allocation12 + $0x2f0] sm:$0xff]
    %v1704 = vld [vmem:[#allocation12 + $0x2f8] sm:$0xff]
    %v1705 = vld [vmem:[#allocation12 + $0x300] sm:$0xff]
    %v1706 = vld [vmem:[#allocation12 + $0x308] sm:$0xff]
    %v1707 = vld [vmem:[#allocation12 + $0x310] sm:$0xff]
    %v1708 = vld [vmem:[#allocation12 + $0x318] sm:$0xff]
    %v1709 = vld [vmem:[#allocation12 + $0x320] sm:$0xff]
    %v1710 = vld [vmem:[#allocation12 + $0x328] sm:$0xff]
    %v1711 = vld [vmem:[#allocation12 + $0x330] sm:$0xff]
    %v1712 = vld [vmem:[#allocation12 + $0x338] sm:$0xff]
    %v1713 = vld [vmem:[#allocation12 + $0x340] sm:$0xff]
    %v1714 = vld [vmem:[#allocation12 + $0x348] sm:$0xff]
    %v1715 = vld [vmem:[#allocation12 + $0x350] sm:$0xff]
    %v1716 = vld [vmem:[#allocation12 + $0x358] sm:$0xff]
    %v1717 = vld [vmem:[#allocation12 + $0x360] sm:$0xff]
    %v1718 = vld [vmem:[#allocation12 + $0x368] sm:$0xff]
    %v1719 = vld [vmem:[#allocation12 + $0x370] sm:$0xff]
    %v1720 = vld [vmem:[#allocation12 + $0x378] sm:$0xff]
    %v1721 = vld [vmem:[#allocation12 + $0x380] sm:$0xff]
    %v1722 = vld [vmem:[#allocation12 + $0x388] sm:$0xff]
    %v1723 = vld [vmem:[#allocation12 + $0x390] sm:$0xff]
    %v1724 = vld [vmem:[#allocation12 + $0x398] sm:$0xff]
    %v1725 = vld [vmem:[#allocation12 + $0x3a0] sm:$0xff]
    %v1726 = vld [vmem:[#allocation12 + $0x3a8] sm:$0xff]
    %v1727 = vld [vmem:[#allocation12 + $0x3b0] sm:$0xff]
    %v1728 = vld [vmem:[#allocation12 + $0x3b8] sm:$0xff]
    %v1729 = vld [vmem:[#allocation12 + $0x3c0] sm:$0xff]
    %v1730 = vld [vmem:[#allocation12 + $0x3c8] sm:$0xff]
    %v1731 = vld [vmem:[#allocation12 + $0x3d0] sm:$0xff]
    %v1732 = vld [vmem:[#allocation12 + $0x3d8] sm:$0xff]
    %v1733 = vld [vmem:[#allocation12 + $0x3e0] sm:$0xff]
    %v1734 = vld [vmem:[#allocation12 + $0x3e8] sm:$0xff]
    %v1735 = vld [vmem:[#allocation12 + $0x3f0] sm:$0xff]
    %v1736 = vld [vmem:[#allocation12 + $0x3f8] sm:$0xff]
    %v1737 = vld [vmem:[#allocation12 + $0x400] sm:$0xff]
    %v1738 = vld [vmem:[#allocation12 + $0x408] sm:$0xff]
    %v1739 = vld [vmem:[#allocation12 + $0x410] sm:$0xff]
    %v1740 = vld [vmem:[#allocation12 + $0x418] sm:$0xff]
    %v1741 = vld [vmem:[#allocation12 + $0x420] sm:$0xff]
    %v1742 = vld [vmem:[#allocation12 + $0x428] sm:$0xff]
    %v1743 = vld [vmem:[#allocation12 + $0x430] sm:$0xff]
    %v1744 = vld [vmem:[#allocation12 + $0x438] sm:$0xff]
    %v1745 = vld [vmem:[#allocation12 + $0x440] sm:$0xff]
    %v1746 = vld [vmem:[#allocation12 + $0x448] sm:$0xff]
    %v1747 = vld [vmem:[#allocation12 + $0x450] sm:$0xff]
    %v1748 = vld [vmem:[#allocation12 + $0x458] sm:$0xff]
    %v1749 = vld [vmem:[#allocation12 + $0x460] sm:$0xff]
    %v1750 = vld [vmem:[#allocation12 + $0x468] sm:$0xff]
    %v1751 = vld [vmem:[#allocation12 + $0x470] sm:$0xff]
    %v1752 = vld [vmem:[#allocation12 + $0x478] sm:$0xff]
    %v1753 = vld [vmem:[#allocation12 + $0x480] sm:$0xff]
    %v1754 = vld [vmem:[#allocation12 + $0x488] sm:$0xff]
    %v1755 = vld [vmem:[#allocation12 + $0x490] sm:$0xff]
    %v1756 = vld [vmem:[#allocation12 + $0x498] sm:$0xff]
    %v1757 = vld [vmem:[#allocation12 + $0x4a0] sm:$0xff]
    %v1758 = vld [vmem:[#allocation12 + $0x4a8] sm:$0xff]
    %v1759 = vld [vmem:[#allocation12 + $0x4b0] sm:$0xff]
    %v1760 = vld [vmem:[#allocation12 + $0x4b8] sm:$0xff]
    %v1761 = vld [vmem:[#allocation12 + $0x4c0] sm:$0xff]
    %v1762 = vld [vmem:[#allocation12 + $0x4c8] sm:$0xff]
    %v1763 = vld [vmem:[#allocation12 + $0x4d0] sm:$0xff]
    %v1764 = vld [vmem:[#allocation12 + $0x4d8] sm:$0xff]
    %v1765 = vld [vmem:[#allocation12 + $0x4e0] sm:$0xff]
    %v1766 = vld [vmem:[#allocation12 + $0x4e8] sm:$0xff]
    %v1767 = vld [vmem:[#allocation12 + $0x4f0] sm:$0xff]
    %v1768 = vld [vmem:[#allocation12 + $0x4f8] sm:$0xff]
    %v1769 = vld [vmem:[#allocation12 + $0x500] sm:$0xff]
    %v1770 = vld [vmem:[#allocation12 + $0x508] sm:$0xff]
    %v1771 = vld [vmem:[#allocation12 + $0x510] sm:$0xff]
    %v1772 = vld [vmem:[#allocation12 + $0x518] sm:$0xff]
    %v1773 = vld [vmem:[#allocation12 + $0x520] sm:$0xff]
    %v1774 = vld [vmem:[#allocation12 + $0x528] sm:$0xff]
    %v1775 = vld [vmem:[#allocation12 + $0x530] sm:$0xff]
    %v1776 = vld [vmem:[#allocation12 + $0x538] sm:$0xff]
    %v1777 = vld [vmem:[#allocation12 + $0x540] sm:$0xff]
    %v1778 = vld [vmem:[#allocation12 + $0x548] sm:$0xff]
    %v1779 = vld [vmem:[#allocation12 + $0x550] sm:$0xff]
    %v1780 = vld [vmem:[#allocation12 + $0x558] sm:$0xff]
    %v1781 = vld [vmem:[#allocation12 + $0x560] sm:$0xff]
    %v1782 = vld [vmem:[#allocation12 + $0x568] sm:$0xff]
    %v1783 = vld [vmem:[#allocation12 + $0x570] sm:$0xff]
    %v1784 = vld [vmem:[#allocation12 + $0x578] sm:$0xff]
    %v1785 = vld [vmem:[#allocation12 + $0x580] sm:$0xff]
    %v1786 = vld [vmem:[#allocation12 + $0x588] sm:$0xff]
    %v1787 = vld [vmem:[#allocation12 + $0x590] sm:$0xff]
    %v1788 = vld [vmem:[#allocation12 + $0x598] sm:$0xff]
    %v1789 = vld [vmem:[#allocation12 + $0x5a0] sm:$0xff]
    %v1790 = vld [vmem:[#allocation12 + $0x5a8] sm:$0xff]
    %v1791 = vld [vmem:[#allocation12 + $0x5b0] sm:$0xff]
    %v1792 = vld [vmem:[#allocation12 + $0x5b8] sm:$0xff]
    %v1793 = vld [vmem:[#allocation12 + $0x5c0] sm:$0xff]
    %v1794 = vld [vmem:[#allocation12 + $0x5c8] sm:$0xf]
    %v1795 = vld [vmem:[#allocation12 + $0x5d0] sm:$0xf]
    %v1796 = vld [vmem:[#allocation12 + $0x5d8] sm:$0xf]
    %v1797 = vld [vmem:[#allocation12 + $0x5e0] sm:$0xf]
    %v1798 = vld [vmem:[#allocation12 + $0x5e8] sm:$0xf]
    %v1799 = vld [vmem:[%s8] sm:$0x1f]
    %v1801 = vperm.slane %v1799, 0
    %v1802 = vperm.slane %v1799, 1
    %v1803 = vperm.slane %v1799, 2
    %v1804 = vperm.slane %v1799, 3
    %v1805 = vperm.slane %v1799, 4
    %vm1811 = vcmask 359424
    %v1813 = vsel %vm1811, %v1608, 0
    %vm1815 = vcmask 1043456
    %v1817 = vsel %vm1815, %v1794, 0
    %v1820 = vsel %vm1815, %v1795, 0
    %v1823 = vsel %vm1815, %v1796, 0
    %v1826 = vsel %vm1815, %v1797, 0
    %v1829 = vsel %vm1815, %v1798, 0
    %1831 = vmatpush.msra.mxu0 %v1684
    %1832 = vmatpush.msra.mxu0 %v1679
    %1833 = vmatpush.msra.mxu0 %v1674
    %1834 = vmatpush.msra.mxu0 %v1669
    %1835 = vmatpush.msra.mxu0 %v1664
    %1836 = vmatpush.msra.mxu0 %v1659
    %1837 = vmatpush.msra.mxu0 %v1654
    %1838 = vmatpush.msra.mxu0 %v1649
    %1839 = vmatpush.msra.mxu0 %v1644
    %1840 = vmatpush.msra.mxu0 %v1639
    %1841 = vmatpush.msra.mxu0 %v1634
    %1842 = vmatpush.msra.mxu0 %v1629
    %1843 = vmatpush.msra.mxu0 %v1624
    %1844 = vmatpush.msra.mxu0 %v1619
    %1845 = vmatpush.msra.mxu0 %v1614
    %1846 = vmatpush.msra.mxu0 %v1609
    %1847 = vmatmul.f32.gmra.mxu0 %v1606
    %v1848 = vpop.f32.mrf.mxu0
    %v1849 = vadd.f32 %v1801, %v1848
    %1850 = vdwg.mxu0
    %1851 = vmatpush.msra.mxu0 %v1764
    %1852 = vmatpush.msra.mxu0 %v1759
    %1853 = vmatpush.msra.mxu0 %v1754
    %1854 = vmatpush.msra.mxu0 %v1749
    %1855 = vmatpush.msra.mxu0 %v1744
    %1856 = vmatpush.msra.mxu0 %v1739
    %1857 = vmatpush.msra.mxu0 %v1734
    %1858 = vmatpush.msra.mxu0 %v1729
    %1859 = vmatpush.msra.mxu0 %v1724
    %1860 = vmatpush.msra.mxu0 %v1719
    %1861 = vmatpush.msra.mxu0 %v1714
    %1862 = vmatpush.msra.mxu0 %v1709
    %1863 = vmatpush.msra.mxu0 %v1704
    %1864 = vmatpush.msra.mxu0 %v1699
    %1865 = vmatpush.msra.mxu0 %v1694
    %1866 = vmatpush.msra.mxu0 %v1689
    %1867 = vmatmul.f32.gmra.mxu0 %v1607
    %v1868 = vpop.f32.mrf.mxu0
    %v1869 = vadd.f32 %v1849, %v1868
    %1870 = vdwg.mxu0
    %1871 = vmatpush.msra.mxu0 0.0
    %1872 = vmatpush.msra.mxu0 0.0
    %1873 = vmatpush.msra.mxu0 0.0
    %1874 = vmatpush.msra.mxu0 0.0
    %1875 = vmatpush.msra.mxu0 0.0
    %1876 = vmatpush.msra.mxu0 0.0
    %1877 = vmatpush.msra.mxu0 0.0
    %1878 = vmatpush.msra.mxu0 0.0
    %1879 = vmatpush.msra.mxu0 0.0
    %1880 = vmatpush.msra.mxu0 0.0
    %1881 = vmatpush.msra.mxu0 %v1817
    %1882 = vmatpush.msra.mxu0 %v1789
    %1883 = vmatpush.msra.mxu0 %v1784
    %1884 = vmatpush.msra.mxu0 %v1779
    %1885 = vmatpush.msra.mxu0 %v1774
    %1886 = vmatpush.msra.mxu0 %v1769
    %1887 = vmatmul.f32.gmra.mxu0 %v1813
    %v1888 = vpop.f32.mrf.mxu0
    %v1889 = vadd.f32 %v1869, %v1888
    %1890 = vdwg.mxu0
    %1891 = vmatpush.msra.mxu0 %v1685
    %1892 = vmatpush.msra.mxu0 %v1680
    %1893 = vmatpush.msra.mxu0 %v1675
    %1894 = vmatpush.msra.mxu0 %v1670
    %1895 = vmatpush.msra.mxu0 %v1665
    %1896 = vmatpush.msra.mxu0 %v1660
    %1897 = vmatpush.msra.mxu0 %v1655
    %1898 = vmatpush.msra.mxu0 %v1650
    %1899 = vmatpush.msra.mxu0 %v1645
    %1900 = vmatpush.msra.mxu0 %v1640
    %1901 = vmatpush.msra.mxu0 %v1635
    %1902 = vmatpush.msra.mxu0 %v1630
    %1903 = vmatpush.msra.mxu0 %v1625
    %1904 = vmatpush.msra.mxu0 %v1620
    %1905 = vmatpush.msra.mxu0 %v1615
    %1906 = vmatpush.msra.mxu0 %v1610
    %1907 = vmatmul.f32.gmra.mxu0 %v1606
    %v1908 = vpop.f32.mrf.mxu0
    %v1909 = vadd.f32 %v1802, %v1908
    %1910 = vdwg.mxu0
    %1911 = vmatpush.msra.mxu0 %v1765
    %1912 = vmatpush.msra.mxu0 %v1760
    %1913 = vmatpush.msra.mxu0 %v1755
    %1914 = vmatpush.msra.mxu0 %v1750
    %1915 = vmatpush.msra.mxu0 %v1745
    %1916 = vmatpush.msra.mxu0 %v1740
    %1917 = vmatpush.msra.mxu0 %v1735
    %1918 = vmatpush.msra.mxu0 %v1730
    %1919 = vmatpush.msra.mxu0 %v1725
    %1920 = vmatpush.msra.mxu0 %v1720
    %1921 = vmatpush.msra.mxu0 %v1715
    %1922 = vmatpush.msra.mxu0 %v1710
    %1923 = vmatpush.msra.mxu0 %v1705
    %1924 = vmatpush.msra.mxu0 %v1700
    %1925 = vmatpush.msra.mxu0 %v1695
    %1926 = vmatpush.msra.mxu0 %v1690
    %1927 = vmatmul.f32.gmra.mxu0 %v1607
    %v1928 = vpop.f32.mrf.mxu0
    %v1929 = vadd.f32 %v1909, %v1928
    %1930 = vdwg.mxu0
    %1931 = vmatpush.msra.mxu0 0.0
    %1932 = vmatpush.msra.mxu0 0.0
    %1933 = vmatpush.msra.mxu0 0.0
    %1934 = vmatpush.msra.mxu0 0.0
    %1935 = vmatpush.msra.mxu0 0.0
    %1936 = vmatpush.msra.mxu0 0.0
    %1937 = vmatpush.msra.mxu0 0.0
    %1938 = vmatpush.msra.mxu0 0.0
    %1939 = vmatpush.msra.mxu0 0.0
    %1940 = vmatpush.msra.mxu0 0.0
    %1941 = vmatpush.msra.mxu0 %v1820
    %1942 = vmatpush.msra.mxu0 %v1790
    %1943 = vmatpush.msra.mxu0 %v1785
    %1944 = vmatpush.msra.mxu0 %v1780
    %1945 = vmatpush.msra.mxu0 %v1775
    %1946 = vmatpush.msra.mxu0 %v1770
    %1947 = vmatmul.f32.gmra.mxu0 %v1813
    %v1948 = vpop.f32.mrf.mxu0
    %v1949 = vadd.f32 %v1929, %v1948
    %1950 = vdwg.mxu0
    %1951 = vmatpush.msra.mxu0 %v1686
    %1952 = vmatpush.msra.mxu0 %v1681
    %1953 = vmatpush.msra.mxu0 %v1676
    %1954 = vmatpush.msra.mxu0 %v1671
    %1955 = vmatpush.msra.mxu0 %v1666
    %1956 = vmatpush.msra.mxu0 %v1661
    %1957 = vmatpush.msra.mxu0 %v1656
    %1958 = vmatpush.msra.mxu0 %v1651
    %1959 = vmatpush.msra.mxu0 %v1646
    %1960 = vmatpush.msra.mxu0 %v1641
    %1961 = vmatpush.msra.mxu0 %v1636
    %1962 = vmatpush.msra.mxu0 %v1631
    %1963 = vmatpush.msra.mxu0 %v1626
    %1964 = vmatpush.msra.mxu0 %v1621
    %1965 = vmatpush.msra.mxu0 %v1616
    %1966 = vmatpush.msra.mxu0 %v1611
    %1967 = vmatmul.f32.gmra.mxu0 %v1606
    %v1968 = vpop.f32.mrf.mxu0
    %v1969 = vadd.f32 %v1803, %v1968
    %1970 = vdwg.mxu0
    %1971 = vmatpush.msra.mxu0 %v1766
    %1972 = vmatpush.msra.mxu0 %v1761
    %1973 = vmatpush.msra.mxu0 %v1756
    %1974 = vmatpush.msra.mxu0 %v1751
    %1975 = vmatpush.msra.mxu0 %v1746
    %1976 = vmatpush.msra.mxu0 %v1741
    %1977 = vmatpush.msra.mxu0 %v1736
    %1978 = vmatpush.msra.mxu0 %v1731
    %1979 = vmatpush.msra.mxu0 %v1726
    %1980 = vmatpush.msra.mxu0 %v1721
    %1981 = vmatpush.msra.mxu0 %v1716
    %1982 = vmatpush.msra.mxu0 %v1711
    %1983 = vmatpush.msra.mxu0 %v1706
    %1984 = vmatpush.msra.mxu0 %v1701
    %1985 = vmatpush.msra.mxu0 %v1696
    %1986 = vmatpush.msra.mxu0 %v1691
    %1987 = vmatmul.f32.gmra.mxu0 %v1607
    %v1988 = vpop.f32.mrf.mxu0
    %v1989 = vadd.f32 %v1969, %v1988
    %1990 = vdwg.mxu0
    %1991 = vmatpush.msra.mxu0 0.0
    %1992 = vmatpush.msra.mxu0 0.0
    %1993 = vmatpush.msra.mxu0 0.0
    %1994 = vmatpush.msra.mxu0 0.0
    %1995 = vmatpush.msra.mxu0 0.0
    %1996 = vmatpush.msra.mxu0 0.0
    %1997 = vmatpush.msra.mxu0 0.0
    %1998 = vmatpush.msra.mxu0 0.0
    %1999 = vmatpush.msra.mxu0 0.0
    %2000 = vmatpush.msra.mxu0 0.0
    %2001 = vmatpush.msra.mxu0 %v1823
    %2002 = vmatpush.msra.mxu0 %v1791
    %2003 = vmatpush.msra.mxu0 %v1786
    %2004 = vmatpush.msra.mxu0 %v1781
    %2005 = vmatpush.msra.mxu0 %v1776
    %2006 = vmatpush.msra.mxu0 %v1771
    %2007 = vmatmul.f32.gmra.mxu0 %v1813
    %v2008 = vpop.f32.mrf.mxu0
    %v2009 = vadd.f32 %v1989, %v2008
    %2010 = vdwg.mxu0
    %2011 = vmatpush.msra.mxu0 %v1687
    %2012 = vmatpush.msra.mxu0 %v1682
    %2013 = vmatpush.msra.mxu0 %v1677
    %2014 = vmatpush.msra.mxu0 %v1672
    %2015 = vmatpush.msra.mxu0 %v1667
    %2016 = vmatpush.msra.mxu0 %v1662
    %2017 = vmatpush.msra.mxu0 %v1657
    %2018 = vmatpush.msra.mxu0 %v1652
    %2019 = vmatpush.msra.mxu0 %v1647
    %2020 = vmatpush.msra.mxu0 %v1642
    %2021 = vmatpush.msra.mxu0 %v1637
    %2022 = vmatpush.msra.mxu0 %v1632
    %2023 = vmatpush.msra.mxu0 %v1627
    %2024 = vmatpush.msra.mxu0 %v1622
    %2025 = vmatpush.msra.mxu0 %v1617
    %2026 = vmatpush.msra.mxu0 %v1612
    %2027 = vmatmul.f32.gmra.mxu0 %v1606
    %v2028 = vpop.f32.mrf.mxu0
    %v2029 = vadd.f32 %v1804, %v2028
    %2030 = vdwg.mxu0
    %2031 = vmatpush.msra.mxu0 %v1767
    %2032 = vmatpush.msra.mxu0 %v1762
    %2033 = vmatpush.msra.mxu0 %v1757
    %2034 = vmatpush.msra.mxu0 %v1752
    %2035 = vmatpush.msra.mxu0 %v1747
    %2036 = vmatpush.msra.mxu0 %v1742
    %2037 = vmatpush.msra.mxu0 %v1737
    %2038 = vmatpush.msra.mxu0 %v1732
    %2039 = vmatpush.msra.mxu0 %v1727
    %2040 = vmatpush.msra.mxu0 %v1722
    %2041 = vmatpush.msra.mxu0 %v1717
    %2042 = vmatpush.msra.mxu0 %v1712
    %2043 = vmatpush.msra.mxu0 %v1707
    %2044 = vmatpush.msra.mxu0 %v1702
    %2045 = vmatpush.msra.mxu0 %v1697
    %2046 = vmatpush.msra.mxu0 %v1692
    %2047 = vmatmul.f32.gmra.mxu0 %v1607
    %v2048 = vpop.f32.mrf.mxu0
    %v2049 = vadd.f32 %v2029, %v2048
    %2050 = vdwg.mxu0
    %2051 = vmatpush.msra.mxu0 0.0
    %2052 = vmatpush.msra.mxu0 0.0
    %2053 = vmatpush.msra.mxu0 0.0
    %2054 = vmatpush.msra.mxu0 0.0
    %2055 = vmatpush.msra.mxu0 0.0
    %2056 = vmatpush.msra.mxu0 0.0
    %2057 = vmatpush.msra.mxu0 0.0
    %2058 = vmatpush.msra.mxu0 0.0
    %2059 = vmatpush.msra.mxu0 0.0
    %2060 = vmatpush.msra.mxu0 0.0
    %2061 = vmatpush.msra.mxu0 %v1826
    %2062 = vmatpush.msra.mxu0 %v1792
    %2063 = vmatpush.msra.mxu0 %v1787
    %2064 = vmatpush.msra.mxu0 %v1782
    %2065 = vmatpush.msra.mxu0 %v1777
    %2066 = vmatpush.msra.mxu0 %v1772
    %2067 = vmatmul.f32.gmra.mxu0 %v1813
    %v2068 = vpop.f32.mrf.mxu0
    %v2069 = vadd.f32 %v2049, %v2068
    %2070 = vdwg.mxu0
    %2071 = vmatpush.msra.mxu0 %v1688
    %2072 = vmatpush.msra.mxu0 %v1683
    %2073 = vmatpush.msra.mxu0 %v1678
    %2074 = vmatpush.msra.mxu0 %v1673
    %2075 = vmatpush.msra.mxu0 %v1668
    %2076 = vmatpush.msra.mxu0 %v1663
    %2077 = vmatpush.msra.mxu0 %v1658
    %2078 = vmatpush.msra.mxu0 %v1653
    %2079 = vmatpush.msra.mxu0 %v1648
    %2080 = vmatpush.msra.mxu0 %v1643
    %2081 = vmatpush.msra.mxu0 %v1638
    %2082 = vmatpush.msra.mxu0 %v1633
    %2083 = vmatpush.msra.mxu0 %v1628
    %2084 = vmatpush.msra.mxu0 %v1623
    %2085 = vmatpush.msra.mxu0 %v1618
    %2086 = vmatpush.msra.mxu0 %v1613
    %2087 = vmatmul.f32.gmra.mxu0 %v1606
    %v2088 = vpop.f32.mrf.mxu0
    %v2089 = vadd.f32 %v1805, %v2088
    %2090 = vdwg.mxu0
    %2091 = vmatpush.msra.mxu0 %v1768
    %2092 = vmatpush.msra.mxu0 %v1763
    %2093 = vmatpush.msra.mxu0 %v1758
    %2094 = vmatpush.msra.mxu0 %v1753
    %2095 = vmatpush.msra.mxu0 %v1748
    %2096 = vmatpush.msra.mxu0 %v1743
    %2097 = vmatpush.msra.mxu0 %v1738
    %2098 = vmatpush.msra.mxu0 %v1733
    %2099 = vmatpush.msra.mxu0 %v1728
    %2100 = vmatpush.msra.mxu0 %v1723
    %2101 = vmatpush.msra.mxu0 %v1718
    %2102 = vmatpush.msra.mxu0 %v1713
    %2103 = vmatpush.msra.mxu0 %v1708
    %2104 = vmatpush.msra.mxu0 %v1703
    %2105 = vmatpush.msra.mxu0 %v1698
    %2106 = vmatpush.msra.mxu0 %v1693
    %2107 = vmatmul.f32.gmra.mxu0 %v1607
    %v2108 = vpop.f32.mrf.mxu0
    %v2109 = vadd.f32 %v2089, %v2108
    %2110 = vdwg.mxu0
    %2111 = vmatpush.msra.mxu0 0.0
    %2112 = vmatpush.msra.mxu0 0.0
    %2113 = vmatpush.msra.mxu0 0.0
    %2114 = vmatpush.msra.mxu0 0.0
    %2115 = vmatpush.msra.mxu0 0.0
    %2116 = vmatpush.msra.mxu0 0.0
    %2117 = vmatpush.msra.mxu0 0.0
    %2118 = vmatpush.msra.mxu0 0.0
    %2119 = vmatpush.msra.mxu0 0.0
    %2120 = vmatpush.msra.mxu0 0.0
    %2121 = vmatpush.msra.mxu0 %v1829
    %2122 = vmatpush.msra.mxu0 %v1793
    %2123 = vmatpush.msra.mxu0 %v1788
    %2124 = vmatpush.msra.mxu0 %v1783
    %2125 = vmatpush.msra.mxu0 %v1778
    %2126 = vmatpush.msra.mxu0 %v1773
    %2127 = vmatmul.f32.gmra.mxu0 %v1813
    %v2128 = vpop.f32.mrf.mxu0
    %v2129 = vadd.f32 %v2109, %v2128
    %2130 = vdwg.mxu0
    %v2131 = vtanh.pop %v1889
    %v2132 = vtanh.pop %v1949
    %v2133 = vtanh.pop %v2009
    %v2134 = vtanh.pop %v2069
    %v2135 = vtanh.pop %v2129
    %v2140 = vrot.slane %v2132, 6
    %v2141 = vrot.slane %v2133, 4
    %v2142 = vrot.slane %v2134, 2
    %vm2143 = vcmask 1041408
    %v2144 = vsel %vm2143, %v2131, %v2140
    %vm2145 = vcmask 1045508
    %v2146 = vsel %vm2145, %v2141, %v2142
    %v2147 = vsel %vm1815, %v2144, %v2146
    %2149 = vst [vmem:[%s9] sm:$0xff] %v2147
    %vm2150 = vcmask 918528
    %2151 = vst.msk [vmem:[%s9 + $0x8] sm:$0x3] %vm2150, %v2135
    // Predicated region
    $region66: #{autoencoder_forward.1} parent=1 // pred_check
      _
    $region67: #{autoencoder_forward.1} parent=1 // pred_check_branch
      %2153 = sbr.rel (0) target = $region69
    $region68: #{autoencoder_forward.1} parent=1 // pred_region
      _
    $region69: #{autoencoder_forward.1} parent=1 // pred_fallthru
      _
    // Predicated region
    $region70: #{autoencoder_forward.1} parent=1 // pred_check
      _
    $region71: #{autoencoder_forward.1} parent=1 // pred_check_branch
      %2155 = sbr.rel (0) target = $region73
    $region72: #{autoencoder_forward.1} parent=1 // pred_region
      _
    $region73: #{autoencoder_forward.1} parent=1 // pred_fallthru
      _
    %2156 = vsyncpa [#allocation3], 1
    %2157 = vsyncpa [#allocation5], 1
    %2158 = vsyncpa [#allocation8], 1
    %2159 = vsyncpa [#allocation11], 1

</llo_original>
